<compile_context>
chip_gen: v5e
topology: v5e:2x2
jax: 0.10.0
libtpu: 0.0.40
codegen_flags: <defaults>
</compile_context>

<pallas_src>
import functools

import jax
import jax.numpy as jnp
from jax.experimental import pallas as pl
from jax.experimental.pallas import tpu as pltpu

EPS = 1e-5  # torch.nn.InstanceNorm2d default eps


# --------------------------------------------------------------------------
# Fused MergeConv kernel (one batch element per grid step)
# --------------------------------------------------------------------------
def _merge_conv_kernel(*refs, H, W, KH, KW, has_mix, stride, do_pool, out_pad):
    """Refs, in order:
       main (1,Cin,HW), flash (1,Cin,HW) [, mix (1,Cin,HW)],
       w_main (F, KH*KW*Cin), w_flash (F, KH*KW*Cin), w_cat (F, KH*KW*Ccat),
       out (1, 3F, out_pad)   -- packed [main_o; flash_o; mix_o], lane-padded.
    """
    it = iter(refs)
    main_ref = next(it)
    flash_ref = next(it)
    mix_ref = next(it) if has_mix else None
    wm_ref = next(it)
    wf_ref = next(it)
    wc_ref = next(it)
    out_ref = next(it)

    HW = H * W
    F = wm_ref.shape[0]
    ph, pw = KH // 2, KW // 2

    # Flat spatial index / column index, hoisted once; reused by every tap mask.
    flat = jax.lax.broadcasted_iota(jnp.int32, (1, HW), 1)
    col = flat % W

    mask_cache = {}

    def valid_mask(dh, dw):
        key = (dh, dw)
        if key not in mask_cache:
            conds = []
            if dh != 0:
                # row+dh in [0,H)  <=>  flat + dh*W in [0, HW)   (no integer div)
                f2 = flat + dh * W
                conds += [f2 >= 0, f2 < HW]
            if dw != 0:
                c2 = col + dw
                conds += [c2 >= 0, c2 < W]
            m = conds[0]
            for c in conds[1:]:
                m = jnp.logical_and(m, c)
            mask_cache[key] = m
        return mask_cache[key]

    def shifted(x, dh, dw):
        """y[:, h*W+w] = x[:, (h+dh)*W+(w+dw)] if in bounds else 0.

        pltpu.roll (XLU) + one masked select; the wrapped-around lanes are
        exactly the out-of-bounds positions, so the mask zeroes them.
        """
        if dh == 0 and dw == 0:
            return x
        s = dh * W + dw
        y = pltpu.roll(x, (-s) % HW, 1)
        return jnp.where(valid_mask(dh, dw), y, 0.0)

    def conv(x, w_ref):
        """'same' conv as ONE MXU dot: (F, KH*KW*C) x im2col (KH*KW*C, HW).

        Conv bias intentionally omitted: a per-channel constant is cancelled
        exactly by the InstanceNorm(affine=False) mean subtraction that follows.
        (This would NOT hold for an affine norm / BatchNorm — revisit then.)
        """
        taps = [shifted(x, kh - ph, kw - pw)
                for kh in range(KH) for kw in range(KW)]
        im2col = jnp.concatenate(taps, axis=0)          # (KH*KW*C, HW)
        return jnp.dot(w_ref[...], im2col, preferred_element_type=jnp.float32)

    inv_hw = 1.0 / HW

    def inorm_relu(y):
        # single-pass statistics: var = E[y^2] - mean^2
        mean = jnp.sum(y, axis=1, keepdims=True) * inv_hw
        ex2 = jnp.sum(y * y, axis=1, keepdims=True) * inv_hw
        var = jnp.maximum(ex2 - mean * mean, 0.0)
        return jnp.maximum((y - mean) * jax.lax.rsqrt(var + EPS), 0.0)

    main_o = inorm_relu(conv(main_ref[0], wm_ref))       # (F, HW)
    flash_o = inorm_relu(conv(flash_ref[0], wf_ref))     # (F, HW)

    # conv_concat: the channel concat is a VMEM sublane concat only; one dot
    # with K = KH*KW*(2F[+Cin]) nearly fills the MXU contraction depth.
    cat_parts = [main_o, flash_o] + ([mix_ref[0]] if has_mix else [])
    cat = jnp.concatenate(cat_parts, axis=0)
    mix_o = main_o + flash_o + inorm_relu(conv(cat, wc_ref))

    packed = jnp.concatenate([main_o, flash_o, mix_o], axis=0)   # (3F, HW)
    R = 3 * F

    if do_pool:
        # Separable 3x3 max pool, pad=1.  0-fill is exact here: every value is
        # >= 0 post-ReLU and the (always valid) centre tap is in every window.
        hmax = jnp.maximum(jnp.maximum(shifted(packed, 0, -1), packed),
                           shifted(packed, 0, 1))
        pooled = jnp.maximum(jnp.maximum(shifted(hmax, -1, 0), hmax),
                             shifted(hmax, 1, 0))
        Ho = (H - 1) // stride + 1
        Wo = (W - 1) // stride + 1
        # Stride subsample WITHOUT the dense (HW, Ho*Wo) selection matrix:
        #   rows    -> Ho contiguous lane slices stacked along sublanes
        #   columns -> one tiny (W, Wo) 0/1 matmul
        rows = jnp.concatenate(
            [pooled[:, ho * stride * W: ho * stride * W + W] for ho in range(Ho)],
            axis=0)                                              # (Ho*3F, W)
        sw = (jax.lax.broadcasted_iota(jnp.int32, (W, Wo), 0) ==
              stride * jax.lax.broadcasted_iota(jnp.int32, (W, Wo), 1)
              ).astype(jnp.float32)
        sub = jnp.dot(rows, sw, preferred_element_type=jnp.float32)   # (Ho*3F, Wo)
        packed = jnp.concatenate(
            [sub[ho * R:(ho + 1) * R] for ho in range(Ho)], axis=1)   # (3F, Ho*Wo)
        out_hw = Ho * Wo
    else:
        out_hw = HW

    if out_pad > out_hw:
        # pad to a 128-lane multiple so the writeback is unmasked full-width.
        packed = jnp.concatenate(
            [packed, jnp.zeros((R, out_pad - out_hw), packed.dtype)], axis=1)
    out_ref[0] = packed.astype(out_ref.dtype)


# --------------------------------------------------------------------------
# Wrapper
# --------------------------------------------------------------------------
def _flat_weight(w_oihw):
    """OIHW (F, C, KH, KW) -> (F, KH*KW*C), tap-major to match the im2col rows."""
    f, c, kh, kw = w_oihw.shape
    return jnp.transpose(w_oihw, (0, 2, 3, 1)).reshape(f, kh * kw * c)


@functools.partial(jax.jit, static_argnames=("stride", "downscale"))
def merge_conv_forward(main, flash, mix, params, *, stride, downscale=True):
    """MergeConv forward.  main/flash/mix: (N, Cin, H, W) NCHW float32."""
    N, Cin, H, W = main.shape
    F, _, KH, KW = params["w_main"].shape
    assert KH % 2 == 1 and KW % 2 == 1, "odd kernel expected for padding='same'"
    HW = H * W
    has_mix = mix is not None
    do_pool = stride > 1 and downscale

    if do_pool:
        out_h = (H - 1) // stride + 1
        out_w = (W - 1) // stride + 1
    else:
        out_h, out_w = H, W
    out_hw = out_h * out_w
    out_pad = -(-out_hw // 128) * 128           # round up to a 128-lane multiple

    wm = _flat_weight(params["w_main"])
    wf = _flat_weight(params["w_flash"])
    wc = _flat_weight(params["w_cat"] if has_mix else params["w_cat_red"])
    # TODO(synk): optionally cast weights/taps to bf16 for the MXU dots on
    # v6e/v7x (keep f32 accumulation); kept f32 here for bit-tight validation.

    act_spec = pl.BlockSpec((1, Cin, HW), lambda n: (n, 0, 0))
    inputs = [main.reshape(N, Cin, HW), flash.reshape(N, Cin, HW)]
    in_specs = [act_spec, act_spec]
    if has_mix:
        inputs.append(mix.reshape(N, Cin, HW))
        in_specs.append(act_spec)
    for w in (wm, wf, wc):
        inputs.append(w)
        # weights are a few KiB total; double-buffering them is negligible.
        in_specs.append(pl.BlockSpec(w.shape, lambda n: (0, 0)))

    # Explicit scoped-VMEM budget (defaults are only 16/32 MiB), with headroom.
    ccat = wc.shape[1] // (KH * KW)
    est = 4 * (2 * 3 * Cin * HW                 # double-buffered activation blocks
               + wm.size + wf.size + wc.size    # resident weights
               + KH * KW * ccat * HW            # largest im2col live at once
               + 8 * F * HW                     # working (F,HW)/(3F,HW) maps
               + 2 * 3 * F * out_pad)           # double-buffered output block
    vmem_limit = int(min(max(2 * est, 32 * 2 ** 20), 64 * 2 ** 20))

    kernel = functools.partial(_merge_conv_kernel, H=H, W=W, KH=KH, KW=KW,
                               has_mix=has_mix, stride=stride, do_pool=do_pool,
                               out_pad=out_pad)
    # TODO(synk): for production H*W / channel counts add a spatial grid axis with
    # a two-pass InstanceNorm (per-channel sum/sum-sq VMEM scratch) so the
    # per-step footprint stays inside v7x's 64 MiB, and split work across both
    # v7x TensorCores when N is small/odd.
    out = pl.pallas_call(
        kernel,
        out_shape=jax.ShapeDtypeStruct((N, 3 * F, out_pad), jnp.float32),
        grid=(N,),
        in_specs=in_specs,
        out_specs=pl.BlockSpec((1, 3 * F, out_pad), lambda n: (n, 0, 0)),
        compiler_params=pltpu.CompilerParams(
            dimension_semantics=("parallel",),
            vmem_limit_bytes=vmem_limit),
    )(*inputs)

    out = out[:, :, :out_hw].reshape(N, 3, F, out_h, out_w)
    main_o, flash_o, mix_o = out[:, 0], out[:, 1], out[:, 2]

    if stride > 1 and not downscale:
        # nearest-neighbour Upsample path: pure layout op, kept in plain JAX.
        rep = lambda t: jnp.repeat(jnp.repeat(t, stride, axis=2), stride, axis=3)
        main_o, flash_o, mix_o = rep(main_o), rep(flash_o), rep(mix_o)
    return main_o, flash_o, mix_o


# --------------------------------------------------------------------------
# Pure-JAX reference (NCHW, with bias — the bias cancellation is verified here)
# --------------------------------------------------------------------------
def _conv_in_relu_ref(x, w, b):
    y = jax.lax.conv_general_dilated(
        x, w, window_strides=(1, 1), padding="SAME",
        dimension_numbers=("NCHW", "OIHW", "NCHW"))
    y = y + b[None, :, None, None]
    mean = jnp.mean(y, axis=(2, 3), keepdims=True)
    var = jnp.mean(jnp.square(y - mean), axis=(2, 3), keepdims=True)
    return jnp.maximum((y - mean) * jax.lax.rsqrt(var + EPS), 0.0)


def _maxpool_ref(x, stride):
    return jax.lax.reduce_window(
        x, -jnp.inf, jax.lax.max, (1, 1, 3, 3), (1, 1, stride, stride),
        [(0, 0), (0, 0), (1, 1), (1, 1)])


def _merge_conv_ref(main, flash, mix, params, *, stride, downscale=True):
    main_o = _conv_in_relu_ref(main, params["w_main"], params["b_main"])
    flash_o = _conv_in_relu_ref(flash, params["w_flash"], params["b_flash"])
    if mix is not None:
        cat = jnp.concatenate([main_o, flash_o, mix], axis=1)
        mix_o = _conv_in_relu_ref(cat, params["w_cat"], params["b_cat"])
    else:
        cat = jnp.concatenate([main_o, flash_o], axis=1)
        mix_o = _conv_in_relu_ref(cat, params["w_cat_red"], params["b_cat_red"])
    mix_o = main_o + flash_o + mix_o
    if stride > 1 and downscale:
        pool = lambda t: _maxpool_ref(t, stride)
    elif stride > 1:
        pool = lambda t: jnp.repeat(jnp.repeat(t, stride, axis=2), stride, axis=3)
    else:
        pool = lambda t: t
    return pool(main_o), pool(flash_o), pool(mix_o)


if __name__ == "__main__":
    N, Cin, H, W = 2, 4, 16, 16
    F, K, STRIDE = 8, 3, 2

    key = jax.random.PRNGKey(0)
    ks = jax.random.split(key, 12)
    wi = lambda k, s: jax.random.normal(k, s, jnp.float32) * 0.1
    params = {  # PyTorch OIHW conv weights + biases
        "w_main": wi(ks[0], (F, Cin, K, K)),          "b_main": wi(ks[1], (F,)),
        "w_flash": wi(ks[2], (F, Cin, K, K)),         "b_flash": wi(ks[3], (F,)),
        "w_cat": wi(ks[4], (F, 2 * F + Cin, K, K)),   "b_cat": wi(ks[5], (F,)),
        "w_cat_red": wi(ks[6], (F, 2 * F, K, K)),     "b_cat_red": wi(ks[7], (F,)),
    }
    main = jax.random.normal(ks[8], (N, Cin, H, W), jnp.float32)
    flash = jax.random.normal(ks[9], (N, Cin, H, W), jnp.float32)
    mix = jax.random.normal(ks[10], (N, Cin, H, W), jnp.float32)

    cases = [
        (mix, STRIDE, True),    # conv_concat branch + max-pool downscale
        (None, STRIDE, True),   # conv_concat_reduced branch + max-pool downscale
        (mix, 1, True),         # stride=1 identity-pool path (no subsample)
    ]
    for mx, s, ds in cases:
        out = jax.block_until_ready(
            merge_conv_forward(main, flash, mx, params, stride=s, downscale=ds))
        ref = _merge_conv_ref(main, flash, mx, params, stride=s, downscale=ds)
        for o, r in zip(out, ref):
            assert o.shape == r.shape, (o.shape, r.shape)
            err = float(jnp.max(jnp.abs(o - r)))
            assert err < 1e-3, f"max abs err too large: {err}"

    print("KERNEL_OK")
</pallas_src>

<mosaic_0001>
module attributes {stable_mosaic.version = 11 : i64} {
  func.func @_merge_conv_kernel(%arg0: i32, %arg1: memref<1x4x256xf32, #tpu.memory_space<vmem>>, %arg2: memref<1x4x256xf32, #tpu.memory_space<vmem>>, %arg3: memref<1x4x256xf32, #tpu.memory_space<vmem>>, %arg4: memref<8x36xf32, #tpu.memory_space<vmem>>, %arg5: memref<8x36xf32, #tpu.memory_space<vmem>>, %arg6: memref<8x180xf32, #tpu.memory_space<vmem>>, %arg7: memref<1x24x128xf32, #tpu.memory_space<vmem>>) attributes {dimension_semantics = [#tpu.dimension_semantics<parallel>], iteration_bounds = array<i64: 2>, scalar_prefetch = 0 : i64, scratch_operands = 0 : i64, tpu.core_type = #tpu.core_type<tc>, window_params = [{transform_indices = @transform_0, window_bounds = array<i64: 1, 4, 256>}, {transform_indices = @transform_1, window_bounds = array<i64: 1, 4, 256>}, {transform_indices = @transform_2, window_bounds = array<i64: 1, 4, 256>}, {pipeline_mode = #tpu.pipeline_mode<synchronous>, transform_indices = @transform_3, window_bounds = array<i64: 8, 36>}, {pipeline_mode = #tpu.pipeline_mode<synchronous>, transform_indices = @transform_4, window_bounds = array<i64: 8, 36>}, {pipeline_mode = #tpu.pipeline_mode<synchronous>, transform_indices = @transform_5, window_bounds = array<i64: 8, 180>}, {transform_indices = @transform_6, window_bounds = array<i64: 1, 24, 128>}]} {
    %0 = tpu.iota {dimensions = array<i32: 1>} : vector<1x256xi32>
    %c16_i32 = arith.constant 16 : i32
    %c0_i32 = arith.constant 0 : i32
    %1 = arith.cmpi eq, %c16_i32, %c0_i32 : i32
    %c1_i32 = arith.constant 1 : i32
    %2 = arith.select %1, %c1_i32, %c16_i32 : i32
    %3 = vector.broadcast %2 : i32 to vector<1x256xi32>
    %4 = arith.remsi %0, %3 : vector<1x256xi32>
    %c0_i32_0 = arith.constant 0 : i32
    %5 = vector.broadcast %c0_i32_0 : i32 to vector<1x256xi32>
    %6 = arith.cmpi ne, %4, %5 : vector<1x256xi32>
    %c0_i32_1 = arith.constant 0 : i32
    %7 = vector.broadcast %c0_i32_1 : i32 to vector<1x256xi32>
    %8 = arith.cmpi slt, %4, %7 : vector<1x256xi32>
    %c0_i32_2 = arith.constant 0 : i32
    %9 = arith.cmpi slt, %2, %c0_i32_2 : i32
    %10 = vector.broadcast %9 : i1 to vector<1x256xi1>
    %11 = vector.broadcast %10 : vector<1x256xi1> to vector<1x256xi1>
    %12 = arith.xori %8, %11 : vector<1x256xi1>
    %13 = arith.andi %12, %6 : vector<1x256xi1>
    %14 = vector.broadcast %2 : i32 to vector<1x256xi32>
    %15 = arith.addi %4, %14 : vector<1x256xi32>
    %16 = arith.select %13, %15, %4 : vector<1x256xi1>, vector<1x256xi32>
    %c0 = arith.constant 0 : index
    %c0_3 = arith.constant 0 : index
    %c0_4 = arith.constant 0 : index
    %17 = vector.load %arg1[%c0, %c0_3, %c0_4] : memref<1x4x256xf32, #tpu.memory_space<vmem>>, vector<1x4x256xf32>
    %18 = vector.shape_cast %17 : vector<1x4x256xf32> to vector<4x256xf32>
    %c17_i32 = arith.constant 17 : i32
    %19 = tpu.dynamic_rotate %18 by %c17_i32 dim 1 : vector<4x256xf32>, i32 -> vector<4x256xf32>
    %c-16_i32 = arith.constant -16 : i32
    %20 = vector.broadcast %c-16_i32 : i32 to vector<1x256xi32>
    %21 = arith.addi %0, %20 : vector<1x256xi32>
    %c0_i32_5 = arith.constant 0 : i32
    %22 = vector.broadcast %c0_i32_5 : i32 to vector<1x256xi32>
    %23 = arith.cmpi sge, %21, %22 : vector<1x256xi32>
    %c256_i32 = arith.constant 256 : i32
    %24 = vector.broadcast %c256_i32 : i32 to vector<1x256xi32>
    %25 = arith.cmpi slt, %21, %24 : vector<1x256xi32>
    %c-1_i32 = arith.constant -1 : i32
    %26 = vector.broadcast %c-1_i32 : i32 to vector<1x256xi32>
    %27 = arith.addi %16, %26 : vector<1x256xi32>
    %c0_i32_6 = arith.constant 0 : i32
    %28 = vector.broadcast %c0_i32_6 : i32 to vector<1x256xi32>
    %29 = arith.cmpi sge, %27, %28 : vector<1x256xi32>
    %c16_i32_7 = arith.constant 16 : i32
    %30 = vector.broadcast %c16_i32_7 : i32 to vector<1x256xi32>
    %31 = arith.cmpi slt, %27, %30 : vector<1x256xi32>
    %32 = arith.andi %23, %25 : vector<1x256xi1>
    %33 = arith.andi %32, %29 : vector<1x256xi1>
    %34 = arith.andi %33, %31 : vector<1x256xi1>
    %cst = arith.constant 0.000000e+00 : f32
    %35 = vector.shape_cast %34 : vector<1x256xi1> to vector<1x256xi1>
    %36 = vector.broadcast %35 : vector<1x256xi1> to vector<4x256xi1>
    %37 = vector.broadcast %cst : f32 to vector<4x256xf32>
    %38 = arith.select %36, %19, %37 : vector<4x256xi1>, vector<4x256xf32>
    %c16_i32_8 = arith.constant 16 : i32
    %39 = tpu.dynamic_rotate %18 by %c16_i32_8 dim 1 : vector<4x256xf32>, i32 -> vector<4x256xf32>
    %c-16_i32_9 = arith.constant -16 : i32
    %40 = vector.broadcast %c-16_i32_9 : i32 to vector<1x256xi32>
    %41 = arith.addi %0, %40 : vector<1x256xi32>
    %c0_i32_10 = arith.constant 0 : i32
    %42 = vector.broadcast %c0_i32_10 : i32 to vector<1x256xi32>
    %43 = arith.cmpi sge, %41, %42 : vector<1x256xi32>
    %c256_i32_11 = arith.constant 256 : i32
    %44 = vector.broadcast %c256_i32_11 : i32 to vector<1x256xi32>
    %45 = arith.cmpi slt, %41, %44 : vector<1x256xi32>
    %46 = arith.andi %43, %45 : vector<1x256xi1>
    %cst_12 = arith.constant 0.000000e+00 : f32
    %47 = vector.shape_cast %46 : vector<1x256xi1> to vector<1x256xi1>
    %48 = vector.broadcast %47 : vector<1x256xi1> to vector<4x256xi1>
    %49 = vector.broadcast %cst_12 : f32 to vector<4x256xf32>
    %50 = arith.select %48, %39, %49 : vector<4x256xi1>, vector<4x256xf32>
    %c15_i32 = arith.constant 15 : i32
    %51 = tpu.dynamic_rotate %18 by %c15_i32 dim 1 : vector<4x256xf32>, i32 -> vector<4x256xf32>
    %c-16_i32_13 = arith.constant -16 : i32
    %52 = vector.broadcast %c-16_i32_13 : i32 to vector<1x256xi32>
    %53 = arith.addi %0, %52 : vector<1x256xi32>
    %c0_i32_14 = arith.constant 0 : i32
    %54 = vector.broadcast %c0_i32_14 : i32 to vector<1x256xi32>
    %55 = arith.cmpi sge, %53, %54 : vector<1x256xi32>
    %c256_i32_15 = arith.constant 256 : i32
    %56 = vector.broadcast %c256_i32_15 : i32 to vector<1x256xi32>
    %57 = arith.cmpi slt, %53, %56 : vector<1x256xi32>
    %c1_i32_16 = arith.constant 1 : i32
    %58 = vector.broadcast %c1_i32_16 : i32 to vector<1x256xi32>
    %59 = arith.addi %16, %58 : vector<1x256xi32>
    %c0_i32_17 = arith.constant 0 : i32
    %60 = vector.broadcast %c0_i32_17 : i32 to vector<1x256xi32>
    %61 = arith.cmpi sge, %59, %60 : vector<1x256xi32>
    %c16_i32_18 = arith.constant 16 : i32
    %62 = vector.broadcast %c16_i32_18 : i32 to vector<1x256xi32>
    %63 = arith.cmpi slt, %59, %62 : vector<1x256xi32>
    %64 = arith.andi %55, %57 : vector<1x256xi1>
    %65 = arith.andi %64, %61 : vector<1x256xi1>
    %66 = arith.andi %65, %63 : vector<1x256xi1>
    %cst_19 = arith.constant 0.000000e+00 : f32
    %67 = vector.shape_cast %66 : vector<1x256xi1> to vector<1x256xi1>
    %68 = vector.broadcast %67 : vector<1x256xi1> to vector<4x256xi1>
    %69 = vector.broadcast %cst_19 : f32 to vector<4x256xf32>
    %70 = arith.select %68, %51, %69 : vector<4x256xi1>, vector<4x256xf32>
    %c1_i32_20 = arith.constant 1 : i32
    %71 = tpu.dynamic_rotate %18 by %c1_i32_20 dim 1 : vector<4x256xf32>, i32 -> vector<4x256xf32>
    %c-1_i32_21 = arith.constant -1 : i32
    %72 = vector.broadcast %c-1_i32_21 : i32 to vector<1x256xi32>
    %73 = arith.addi %16, %72 : vector<1x256xi32>
    %c0_i32_22 = arith.constant 0 : i32
    %74 = vector.broadcast %c0_i32_22 : i32 to vector<1x256xi32>
    %75 = arith.cmpi sge, %73, %74 : vector<1x256xi32>
    %c16_i32_23 = arith.constant 16 : i32
    %76 = vector.broadcast %c16_i32_23 : i32 to vector<1x256xi32>
    %77 = arith.cmpi slt, %73, %76 : vector<1x256xi32>
    %78 = arith.andi %75, %77 : vector<1x256xi1>
    %cst_24 = arith.constant 0.000000e+00 : f32
    %79 = vector.shape_cast %78 : vector<1x256xi1> to vector<1x256xi1>
    %80 = vector.broadcast %79 : vector<1x256xi1> to vector<4x256xi1>
    %81 = vector.broadcast %cst_24 : f32 to vector<4x256xf32>
    %82 = arith.select %80, %71, %81 : vector<4x256xi1>, vector<4x256xf32>
    %c255_i32 = arith.constant 255 : i32
    %83 = tpu.dynamic_rotate %18 by %c255_i32 dim 1 : vector<4x256xf32>, i32 -> vector<4x256xf32>
    %c1_i32_25 = arith.constant 1 : i32
    %84 = vector.broadcast %c1_i32_25 : i32 to vector<1x256xi32>
    %85 = arith.addi %16, %84 : vector<1x256xi32>
    %c0_i32_26 = arith.constant 0 : i32
    %86 = vector.broadcast %c0_i32_26 : i32 to vector<1x256xi32>
    %87 = arith.cmpi sge, %85, %86 : vector<1x256xi32>
    %c16_i32_27 = arith.constant 16 : i32
    %88 = vector.broadcast %c16_i32_27 : i32 to vector<1x256xi32>
    %89 = arith.cmpi slt, %85, %88 : vector<1x256xi32>
    %90 = arith.andi %87, %89 : vector<1x256xi1>
    %cst_28 = arith.constant 0.000000e+00 : f32
    %91 = vector.shape_cast %90 : vector<1x256xi1> to vector<1x256xi1>
    %92 = vector.broadcast %91 : vector<1x256xi1> to vector<4x256xi1>
    %93 = vector.broadcast %cst_28 : f32 to vector<4x256xf32>
    %94 = arith.select %92, %83, %93 : vector<4x256xi1>, vector<4x256xf32>
    %c241_i32 = arith.constant 241 : i32
    %95 = tpu.dynamic_rotate %18 by %c241_i32 dim 1 : vector<4x256xf32>, i32 -> vector<4x256xf32>
    %c16_i32_29 = arith.constant 16 : i32
    %96 = vector.broadcast %c16_i32_29 : i32 to vector<1x256xi32>
    %97 = arith.addi %0, %96 : vector<1x256xi32>
    %c0_i32_30 = arith.constant 0 : i32
    %98 = vector.broadcast %c0_i32_30 : i32 to vector<1x256xi32>
    %99 = arith.cmpi sge, %97, %98 : vector<1x256xi32>
    %c256_i32_31 = arith.constant 256 : i32
    %100 = vector.broadcast %c256_i32_31 : i32 to vector<1x256xi32>
    %101 = arith.cmpi slt, %97, %100 : vector<1x256xi32>
    %c-1_i32_32 = arith.constant -1 : i32
    %102 = vector.broadcast %c-1_i32_32 : i32 to vector<1x256xi32>
    %103 = arith.addi %16, %102 : vector<1x256xi32>
    %c0_i32_33 = arith.constant 0 : i32
    %104 = vector.broadcast %c0_i32_33 : i32 to vector<1x256xi32>
    %105 = arith.cmpi sge, %103, %104 : vector<1x256xi32>
    %c16_i32_34 = arith.constant 16 : i32
    %106 = vector.broadcast %c16_i32_34 : i32 to vector<1x256xi32>
    %107 = arith.cmpi slt, %103, %106 : vector<1x256xi32>
    %108 = arith.andi %99, %101 : vector<1x256xi1>
    %109 = arith.andi %108, %105 : vector<1x256xi1>
    %110 = arith.andi %109, %107 : vector<1x256xi1>
    %cst_35 = arith.constant 0.000000e+00 : f32
    %111 = vector.shape_cast %110 : vector<1x256xi1> to vector<1x256xi1>
    %112 = vector.broadcast %111 : vector<1x256xi1> to vector<4x256xi1>
    %113 = vector.broadcast %cst_35 : f32 to vector<4x256xf32>
    %114 = arith.select %112, %95, %113 : vector<4x256xi1>, vector<4x256xf32>
    %c240_i32 = arith.constant 240 : i32
    %115 = tpu.dynamic_rotate %18 by %c240_i32 dim 1 : vector<4x256xf32>, i32 -> vector<4x256xf32>
    %c16_i32_36 = arith.constant 16 : i32
    %116 = vector.broadcast %c16_i32_36 : i32 to vector<1x256xi32>
    %117 = arith.addi %0, %116 : vector<1x256xi32>
    %c0_i32_37 = arith.constant 0 : i32
    %118 = vector.broadcast %c0_i32_37 : i32 to vector<1x256xi32>
    %119 = arith.cmpi sge, %117, %118 : vector<1x256xi32>
    %c256_i32_38 = arith.constant 256 : i32
    %120 = vector.broadcast %c256_i32_38 : i32 to vector<1x256xi32>
    %121 = arith.cmpi slt, %117, %120 : vector<1x256xi32>
    %122 = arith.andi %119, %121 : vector<1x256xi1>
    %cst_39 = arith.constant 0.000000e+00 : f32
    %123 = vector.shape_cast %122 : vector<1x256xi1> to vector<1x256xi1>
    %124 = vector.broadcast %123 : vector<1x256xi1> to vector<4x256xi1>
    %125 = vector.broadcast %cst_39 : f32 to vector<4x256xf32>
    %126 = arith.select %124, %115, %125 : vector<4x256xi1>, vector<4x256xf32>
    %c239_i32 = arith.constant 239 : i32
    %127 = tpu.dynamic_rotate %18 by %c239_i32 dim 1 : vector<4x256xf32>, i32 -> vector<4x256xf32>
    %c16_i32_40 = arith.constant 16 : i32
    %128 = vector.broadcast %c16_i32_40 : i32 to vector<1x256xi32>
    %129 = arith.addi %0, %128 : vector<1x256xi32>
    %c0_i32_41 = arith.constant 0 : i32
    %130 = vector.broadcast %c0_i32_41 : i32 to vector<1x256xi32>
    %131 = arith.cmpi sge, %129, %130 : vector<1x256xi32>
    %c256_i32_42 = arith.constant 256 : i32
    %132 = vector.broadcast %c256_i32_42 : i32 to vector<1x256xi32>
    %133 = arith.cmpi slt, %129, %132 : vector<1x256xi32>
    %c1_i32_43 = arith.constant 1 : i32
    %134 = vector.broadcast %c1_i32_43 : i32 to vector<1x256xi32>
    %135 = arith.addi %16, %134 : vector<1x256xi32>
    %c0_i32_44 = arith.constant 0 : i32
    %136 = vector.broadcast %c0_i32_44 : i32 to vector<1x256xi32>
    %137 = arith.cmpi sge, %135, %136 : vector<1x256xi32>
    %c16_i32_45 = arith.constant 16 : i32
    %138 = vector.broadcast %c16_i32_45 : i32 to vector<1x256xi32>
    %139 = arith.cmpi slt, %135, %138 : vector<1x256xi32>
    %140 = arith.andi %131, %133 : vector<1x256xi1>
    %141 = arith.andi %140, %137 : vector<1x256xi1>
    %142 = arith.andi %141, %139 : vector<1x256xi1>
    %cst_46 = arith.constant 0.000000e+00 : f32
    %143 = vector.shape_cast %142 : vector<1x256xi1> to vector<1x256xi1>
    %144 = vector.broadcast %143 : vector<1x256xi1> to vector<4x256xi1>
    %145 = vector.broadcast %cst_46 : f32 to vector<4x256xf32>
    %146 = arith.select %144, %127, %145 : vector<4x256xi1>, vector<4x256xf32>
    %147 = tpu.concatenate %38, %50, %70, %82, %18, %94, %114, %126, %146 in 0 : vector<4x256xf32>, vector<4x256xf32>, vector<4x256xf32>, vector<4x256xf32>, vector<4x256xf32>, vector<4x256xf32>, vector<4x256xf32>, vector<4x256xf32>, vector<4x256xf32> -> vector<36x256xf32>
    %c0_47 = arith.constant 0 : index
    %c0_48 = arith.constant 0 : index
    %148 = vector.load %arg4[%c0_47, %c0_48] : memref<8x36xf32, #tpu.memory_space<vmem>>, vector<8x36xf32>
    %cst_49 = arith.constant dense<0.000000e+00> : vector<8x256xf32>
    %149 = tpu.matmul %148, %147, %cst_49 {dimension_numbers = #tpu.dot_dimension_numbers<[1], [0], [0], [1], [0, 0, 1, 1], [], []>} : vector<8x36xf32>, vector<36x256xf32>, vector<8x256xf32> -> vector<8x256xf32>
    %cst_50 = arith.constant dense<0.000000e+00> : vector<8xf32>
    %150 = vector.multi_reduction <add>, %149, %cst_50 [1] : vector<8x256xf32> to vector<8xf32>
    %151 = vector.shape_cast %150 : vector<8xf32> to vector<8x1xf32>
    %cst_51 = arith.constant 3.906250e-03 : f32
    %152 = vector.broadcast %cst_51 : f32 to vector<8x1xf32>
    %153 = arith.mulf %151, %152 : vector<8x1xf32>
    %154 = arith.mulf %149, %149 : vector<8x256xf32>
    %cst_52 = arith.constant dense<0.000000e+00> : vector<8xf32>
    %155 = vector.multi_reduction <add>, %154, %cst_52 [1] : vector<8x256xf32> to vector<8xf32>
    %156 = vector.shape_cast %155 : vector<8xf32> to vector<8x1xf32>
    %cst_53 = arith.constant 3.906250e-03 : f32
    %157 = vector.broadcast %cst_53 : f32 to vector<8x1xf32>
    %158 = arith.mulf %156, %157 : vector<8x1xf32>
    %159 = arith.mulf %153, %153 : vector<8x1xf32>
    %160 = arith.subf %158, %159 : vector<8x1xf32>
    %cst_54 = arith.constant 0.000000e+00 : f32
    %161 = vector.broadcast %cst_54 : f32 to vector<8x1xf32>
    %162 = arith.maximumf %160, %161 : vector<8x1xf32>
    %163 = vector.broadcast %153 : vector<8x1xf32> to vector<8x256xf32>
    %164 = arith.subf %149, %163 : vector<8x256xf32>
    %cst_55 = arith.constant 9.99999974E-6 : f32
    %165 = vector.broadcast %cst_55 : f32 to vector<8x1xf32>
    %166 = arith.addf %162, %165 : vector<8x1xf32>
    %167 = math.rsqrt %166 : vector<8x1xf32>
    %168 = vector.broadcast %167 : vector<8x1xf32> to vector<8x256xf32>
    %169 = arith.mulf %164, %168 : vector<8x256xf32>
    %cst_56 = arith.constant 0.000000e+00 : f32
    %170 = vector.broadcast %cst_56 : f32 to vector<8x256xf32>
    %171 = arith.maximumf %169, %170 : vector<8x256xf32>
    %c0_57 = arith.constant 0 : index
    %c0_58 = arith.constant 0 : index
    %c0_59 = arith.constant 0 : index
    %172 = vector.load %arg2[%c0_57, %c0_58, %c0_59] : memref<1x4x256xf32, #tpu.memory_space<vmem>>, vector<1x4x256xf32>
    %173 = vector.shape_cast %172 : vector<1x4x256xf32> to vector<4x256xf32>
    %c17_i32_60 = arith.constant 17 : i32
    %174 = tpu.dynamic_rotate %173 by %c17_i32_60 dim 1 : vector<4x256xf32>, i32 -> vector<4x256xf32>
    %cst_61 = arith.constant 0.000000e+00 : f32
    %175 = vector.shape_cast %34 : vector<1x256xi1> to vector<1x256xi1>
    %176 = vector.broadcast %175 : vector<1x256xi1> to vector<4x256xi1>
    %177 = vector.broadcast %cst_61 : f32 to vector<4x256xf32>
    %178 = arith.select %176, %174, %177 : vector<4x256xi1>, vector<4x256xf32>
    %c16_i32_62 = arith.constant 16 : i32
    %179 = tpu.dynamic_rotate %173 by %c16_i32_62 dim 1 : vector<4x256xf32>, i32 -> vector<4x256xf32>
    %cst_63 = arith.constant 0.000000e+00 : f32
    %180 = vector.shape_cast %46 : vector<1x256xi1> to vector<1x256xi1>
    %181 = vector.broadcast %180 : vector<1x256xi1> to vector<4x256xi1>
    %182 = vector.broadcast %cst_63 : f32 to vector<4x256xf32>
    %183 = arith.select %181, %179, %182 : vector<4x256xi1>, vector<4x256xf32>
    %c15_i32_64 = arith.constant 15 : i32
    %184 = tpu.dynamic_rotate %173 by %c15_i32_64 dim 1 : vector<4x256xf32>, i32 -> vector<4x256xf32>
    %cst_65 = arith.constant 0.000000e+00 : f32
    %185 = vector.shape_cast %66 : vector<1x256xi1> to vector<1x256xi1>
    %186 = vector.broadcast %185 : vector<1x256xi1> to vector<4x256xi1>
    %187 = vector.broadcast %cst_65 : f32 to vector<4x256xf32>
    %188 = arith.select %186, %184, %187 : vector<4x256xi1>, vector<4x256xf32>
    %c1_i32_66 = arith.constant 1 : i32
    %189 = tpu.dynamic_rotate %173 by %c1_i32_66 dim 1 : vector<4x256xf32>, i32 -> vector<4x256xf32>
    %cst_67 = arith.constant 0.000000e+00 : f32
    %190 = vector.shape_cast %78 : vector<1x256xi1> to vector<1x256xi1>
    %191 = vector.broadcast %190 : vector<1x256xi1> to vector<4x256xi1>
    %192 = vector.broadcast %cst_67 : f32 to vector<4x256xf32>
    %193 = arith.select %191, %189, %192 : vector<4x256xi1>, vector<4x256xf32>
    %c255_i32_68 = arith.constant 255 : i32
    %194 = tpu.dynamic_rotate %173 by %c255_i32_68 dim 1 : vector<4x256xf32>, i32 -> vector<4x256xf32>
    %cst_69 = arith.constant 0.000000e+00 : f32
    %195 = vector.shape_cast %90 : vector<1x256xi1> to vector<1x256xi1>
    %196 = vector.broadcast %195 : vector<1x256xi1> to vector<4x256xi1>
    %197 = vector.broadcast %cst_69 : f32 to vector<4x256xf32>
    %198 = arith.select %196, %194, %197 : vector<4x256xi1>, vector<4x256xf32>
    %c241_i32_70 = arith.constant 241 : i32
    %199 = tpu.dynamic_rotate %173 by %c241_i32_70 dim 1 : vector<4x256xf32>, i32 -> vector<4x256xf32>
    %cst_71 = arith.constant 0.000000e+00 : f32
    %200 = vector.shape_cast %110 : vector<1x256xi1> to vector<1x256xi1>
    %201 = vector.broadcast %200 : vector<1x256xi1> to vector<4x256xi1>
    %202 = vector.broadcast %cst_71 : f32 to vector<4x256xf32>
    %203 = arith.select %201, %199, %202 : vector<4x256xi1>, vector<4x256xf32>
    %c240_i32_72 = arith.constant 240 : i32
    %204 = tpu.dynamic_rotate %173 by %c240_i32_72 dim 1 : vector<4x256xf32>, i32 -> vector<4x256xf32>
    %cst_73 = arith.constant 0.000000e+00 : f32
    %205 = vector.shape_cast %122 : vector<1x256xi1> to vector<1x256xi1>
    %206 = vector.broadcast %205 : vector<1x256xi1> to vector<4x256xi1>
    %207 = vector.broadcast %cst_73 : f32 to vector<4x256xf32>
    %208 = arith.select %206, %204, %207 : vector<4x256xi1>, vector<4x256xf32>
    %c239_i32_74 = arith.constant 239 : i32
    %209 = tpu.dynamic_rotate %173 by %c239_i32_74 dim 1 : vector<4x256xf32>, i32 -> vector<4x256xf32>
    %cst_75 = arith.constant 0.000000e+00 : f32
    %210 = vector.shape_cast %142 : vector<1x256xi1> to vector<1x256xi1>
    %211 = vector.broadcast %210 : vector<1x256xi1> to vector<4x256xi1>
    %212 = vector.broadcast %cst_75 : f32 to vector<4x256xf32>
    %213 = arith.select %211, %209, %212 : vector<4x256xi1>, vector<4x256xf32>
    %214 = tpu.concatenate %178, %183, %188, %193, %173, %198, %203, %208, %213 in 0 : vector<4x256xf32>, vector<4x256xf32>, vector<4x256xf32>, vector<4x256xf32>, vector<4x256xf32>, vector<4x256xf32>, vector<4x256xf32>, vector<4x256xf32>, vector<4x256xf32> -> vector<36x256xf32>
    %c0_76 = arith.constant 0 : index
    %c0_77 = arith.constant 0 : index
    %215 = vector.load %arg5[%c0_76, %c0_77] : memref<8x36xf32, #tpu.memory_space<vmem>>, vector<8x36xf32>
    %cst_78 = arith.constant dense<0.000000e+00> : vector<8x256xf32>
    %216 = tpu.matmul %215, %214, %cst_78 {dimension_numbers = #tpu.dot_dimension_numbers<[1], [0], [0], [1], [0, 0, 1, 1], [], []>} : vector<8x36xf32>, vector<36x256xf32>, vector<8x256xf32> -> vector<8x256xf32>
    %cst_79 = arith.constant dense<0.000000e+00> : vector<8xf32>
    %217 = vector.multi_reduction <add>, %216, %cst_79 [1] : vector<8x256xf32> to vector<8xf32>
    %218 = vector.shape_cast %217 : vector<8xf32> to vector<8x1xf32>
    %cst_80 = arith.constant 3.906250e-03 : f32
    %219 = vector.broadcast %cst_80 : f32 to vector<8x1xf32>
    %220 = arith.mulf %218, %219 : vector<8x1xf32>
    %221 = arith.mulf %216, %216 : vector<8x256xf32>
    %cst_81 = arith.constant dense<0.000000e+00> : vector<8xf32>
    %222 = vector.multi_reduction <add>, %221, %cst_81 [1] : vector<8x256xf32> to vector<8xf32>
    %223 = vector.shape_cast %222 : vector<8xf32> to vector<8x1xf32>
    %cst_82 = arith.constant 3.906250e-03 : f32
    %224 = vector.broadcast %cst_82 : f32 to vector<8x1xf32>
    %225 = arith.mulf %223, %224 : vector<8x1xf32>
    %226 = arith.mulf %220, %220 : vector<8x1xf32>
    %227 = arith.subf %225, %226 : vector<8x1xf32>
    %cst_83 = arith.constant 0.000000e+00 : f32
    %228 = vector.broadcast %cst_83 : f32 to vector<8x1xf32>
    %229 = arith.maximumf %227, %228 : vector<8x1xf32>
    %230 = vector.broadcast %220 : vector<8x1xf32> to vector<8x256xf32>
    %231 = arith.subf %216, %230 : vector<8x256xf32>
    %cst_84 = arith.constant 9.99999974E-6 : f32
    %232 = vector.broadcast %cst_84 : f32 to vector<8x1xf32>
    %233 = arith.addf %229, %232 : vector<8x1xf32>
    %234 = math.rsqrt %233 : vector<8x1xf32>
    %235 = vector.broadcast %234 : vector<8x1xf32> to vector<8x256xf32>
    %236 = arith.mulf %231, %235 : vector<8x256xf32>
    %cst_85 = arith.constant 0.000000e+00 : f32
    %237 = vector.broadcast %cst_85 : f32 to vector<8x256xf32>
    %238 = arith.maximumf %236, %237 : vector<8x256xf32>
    %c0_86 = arith.constant 0 : index
    %c0_87 = arith.constant 0 : index
    %c0_88 = arith.constant 0 : index
    %239 = vector.load %arg3[%c0_86, %c0_87, %c0_88] : memref<1x4x256xf32, #tpu.memory_space<vmem>>, vector<1x4x256xf32>
    %240 = vector.shape_cast %239 : vector<1x4x256xf32> to vector<4x256xf32>
    %241 = tpu.concatenate %171, %238, %240 in 0 : vector<8x256xf32>, vector<8x256xf32>, vector<4x256xf32> -> vector<20x256xf32>
    %242 = arith.addf %171, %238 : vector<8x256xf32>
    %c17_i32_89 = arith.constant 17 : i32
    %243 = tpu.dynamic_rotate %241 by %c17_i32_89 dim 1 : vector<20x256xf32>, i32 -> vector<20x256xf32>
    %cst_90 = arith.constant 0.000000e+00 : f32
    %244 = vector.shape_cast %34 : vector<1x256xi1> to vector<1x256xi1>
    %245 = vector.broadcast %244 : vector<1x256xi1> to vector<20x256xi1>
    %246 = vector.broadcast %cst_90 : f32 to vector<20x256xf32>
    %247 = arith.select %245, %243, %246 : vector<20x256xi1>, vector<20x256xf32>
    %c16_i32_91 = arith.constant 16 : i32
    %248 = tpu.dynamic_rotate %241 by %c16_i32_91 dim 1 : vector<20x256xf32>, i32 -> vector<20x256xf32>
    %cst_92 = arith.constant 0.000000e+00 : f32
    %249 = vector.shape_cast %46 : vector<1x256xi1> to vector<1x256xi1>
    %250 = vector.broadcast %249 : vector<1x256xi1> to vector<20x256xi1>
    %251 = vector.broadcast %cst_92 : f32 to vector<20x256xf32>
    %252 = arith.select %250, %248, %251 : vector<20x256xi1>, vector<20x256xf32>
    %c15_i32_93 = arith.constant 15 : i32
    %253 = tpu.dynamic_rotate %241 by %c15_i32_93 dim 1 : vector<20x256xf32>, i32 -> vector<20x256xf32>
    %cst_94 = arith.constant 0.000000e+00 : f32
    %254 = vector.shape_cast %66 : vector<1x256xi1> to vector<1x256xi1>
    %255 = vector.broadcast %254 : vector<1x256xi1> to vector<20x256xi1>
    %256 = vector.broadcast %cst_94 : f32 to vector<20x256xf32>
    %257 = arith.select %255, %253, %256 : vector<20x256xi1>, vector<20x256xf32>
    %c1_i32_95 = arith.constant 1 : i32
    %258 = tpu.dynamic_rotate %241 by %c1_i32_95 dim 1 : vector<20x256xf32>, i32 -> vector<20x256xf32>
    %cst_96 = arith.constant 0.000000e+00 : f32
    %259 = vector.shape_cast %78 : vector<1x256xi1> to vector<1x256xi1>
    %260 = vector.broadcast %259 : vector<1x256xi1> to vector<20x256xi1>
    %261 = vector.broadcast %cst_96 : f32 to vector<20x256xf32>
    %262 = arith.select %260, %258, %261 : vector<20x256xi1>, vector<20x256xf32>
    %c255_i32_97 = arith.constant 255 : i32
    %263 = tpu.dynamic_rotate %241 by %c255_i32_97 dim 1 : vector<20x256xf32>, i32 -> vector<20x256xf32>
    %cst_98 = arith.constant 0.000000e+00 : f32
    %264 = vector.shape_cast %90 : vector<1x256xi1> to vector<1x256xi1>
    %265 = vector.broadcast %264 : vector<1x256xi1> to vector<20x256xi1>
    %266 = vector.broadcast %cst_98 : f32 to vector<20x256xf32>
    %267 = arith.select %265, %263, %266 : vector<20x256xi1>, vector<20x256xf32>
    %c241_i32_99 = arith.constant 241 : i32
    %268 = tpu.dynamic_rotate %241 by %c241_i32_99 dim 1 : vector<20x256xf32>, i32 -> vector<20x256xf32>
    %cst_100 = arith.constant 0.000000e+00 : f32
    %269 = vector.shape_cast %110 : vector<1x256xi1> to vector<1x256xi1>
    %270 = vector.broadcast %269 : vector<1x256xi1> to vector<20x256xi1>
    %271 = vector.broadcast %cst_100 : f32 to vector<20x256xf32>
    %272 = arith.select %270, %268, %271 : vector<20x256xi1>, vector<20x256xf32>
    %c240_i32_101 = arith.constant 240 : i32
    %273 = tpu.dynamic_rotate %241 by %c240_i32_101 dim 1 : vector<20x256xf32>, i32 -> vector<20x256xf32>
    %cst_102 = arith.constant 0.000000e+00 : f32
    %274 = vector.shape_cast %122 : vector<1x256xi1> to vector<1x256xi1>
    %275 = vector.broadcast %274 : vector<1x256xi1> to vector<20x256xi1>
    %276 = vector.broadcast %cst_102 : f32 to vector<20x256xf32>
    %277 = arith.select %275, %273, %276 : vector<20x256xi1>, vector<20x256xf32>
    %c239_i32_103 = arith.constant 239 : i32
    %278 = tpu.dynamic_rotate %241 by %c239_i32_103 dim 1 : vector<20x256xf32>, i32 -> vector<20x256xf32>
    %cst_104 = arith.constant 0.000000e+00 : f32
    %279 = vector.shape_cast %142 : vector<1x256xi1> to vector<1x256xi1>
    %280 = vector.broadcast %279 : vector<1x256xi1> to vector<20x256xi1>
    %281 = vector.broadcast %cst_104 : f32 to vector<20x256xf32>
    %282 = arith.select %280, %278, %281 : vector<20x256xi1>, vector<20x256xf32>
    %283 = tpu.concatenate %247, %252, %257, %262, %241, %267, %272, %277, %282 in 0 : vector<20x256xf32>, vector<20x256xf32>, vector<20x256xf32>, vector<20x256xf32>, vector<20x256xf32>, vector<20x256xf32>, vector<20x256xf32>, vector<20x256xf32>, vector<20x256xf32> -> vector<180x256xf32>
    %c0_105 = arith.constant 0 : index
    %c0_106 = arith.constant 0 : index
    %284 = vector.load %arg6[%c0_105, %c0_106] : memref<8x180xf32, #tpu.memory_space<vmem>>, vector<8x180xf32>
    %cst_107 = arith.constant dense<0.000000e+00> : vector<8x256xf32>
    %285 = tpu.matmul %284, %283, %cst_107 {dimension_numbers = #tpu.dot_dimension_numbers<[1], [0], [0], [1], [0, 0, 1, 1], [], []>} : vector<8x180xf32>, vector<180x256xf32>, vector<8x256xf32> -> vector<8x256xf32>
    %cst_108 = arith.constant dense<0.000000e+00> : vector<8xf32>
    %286 = vector.multi_reduction <add>, %285, %cst_108 [1] : vector<8x256xf32> to vector<8xf32>
    %287 = vector.shape_cast %286 : vector<8xf32> to vector<8x1xf32>
    %cst_109 = arith.constant 3.906250e-03 : f32
    %288 = vector.broadcast %cst_109 : f32 to vector<8x1xf32>
    %289 = arith.mulf %287, %288 : vector<8x1xf32>
    %290 = arith.mulf %285, %285 : vector<8x256xf32>
    %cst_110 = arith.constant dense<0.000000e+00> : vector<8xf32>
    %291 = vector.multi_reduction <add>, %290, %cst_110 [1] : vector<8x256xf32> to vector<8xf32>
    %292 = vector.shape_cast %291 : vector<8xf32> to vector<8x1xf32>
    %cst_111 = arith.constant 3.906250e-03 : f32
    %293 = vector.broadcast %cst_111 : f32 to vector<8x1xf32>
    %294 = arith.mulf %292, %293 : vector<8x1xf32>
    %295 = arith.mulf %289, %289 : vector<8x1xf32>
    %296 = arith.subf %294, %295 : vector<8x1xf32>
    %cst_112 = arith.constant 0.000000e+00 : f32
    %297 = vector.broadcast %cst_112 : f32 to vector<8x1xf32>
    %298 = arith.maximumf %296, %297 : vector<8x1xf32>
    %299 = vector.broadcast %289 : vector<8x1xf32> to vector<8x256xf32>
    %300 = arith.subf %285, %299 : vector<8x256xf32>
    %cst_113 = arith.constant 9.99999974E-6 : f32
    %301 = vector.broadcast %cst_113 : f32 to vector<8x1xf32>
    %302 = arith.addf %298, %301 : vector<8x1xf32>
    %303 = math.rsqrt %302 : vector<8x1xf32>
    %304 = vector.broadcast %303 : vector<8x1xf32> to vector<8x256xf32>
    %305 = arith.mulf %300, %304 : vector<8x256xf32>
    %cst_114 = arith.constant 0.000000e+00 : f32
    %306 = vector.broadcast %cst_114 : f32 to vector<8x256xf32>
    %307 = arith.maximumf %305, %306 : vector<8x256xf32>
    %308 = arith.addf %242, %307 : vector<8x256xf32>
    %309 = tpu.concatenate %171, %238, %308 in 0 : vector<8x256xf32>, vector<8x256xf32>, vector<8x256xf32> -> vector<24x256xf32>
    %c1_i32_115 = arith.constant 1 : i32
    %310 = tpu.dynamic_rotate %309 by %c1_i32_115 dim 1 : vector<24x256xf32>, i32 -> vector<24x256xf32>
    %cst_116 = arith.constant 0.000000e+00 : f32
    %311 = vector.shape_cast %78 : vector<1x256xi1> to vector<1x256xi1>
    %312 = vector.broadcast %311 : vector<1x256xi1> to vector<24x256xi1>
    %313 = vector.broadcast %cst_116 : f32 to vector<24x256xf32>
    %314 = arith.select %312, %310, %313 : vector<24x256xi1>, vector<24x256xf32>
    %315 = arith.maximumf %314, %309 : vector<24x256xf32>
    %c255_i32_117 = arith.constant 255 : i32
    %316 = tpu.dynamic_rotate %309 by %c255_i32_117 dim 1 : vector<24x256xf32>, i32 -> vector<24x256xf32>
    %cst_118 = arith.constant 0.000000e+00 : f32
    %317 = vector.shape_cast %90 : vector<1x256xi1> to vector<1x256xi1>
    %318 = vector.broadcast %317 : vector<1x256xi1> to vector<24x256xi1>
    %319 = vector.broadcast %cst_118 : f32 to vector<24x256xf32>
    %320 = arith.select %318, %316, %319 : vector<24x256xi1>, vector<24x256xf32>
    %321 = arith.maximumf %315, %320 : vector<24x256xf32>
    %c16_i32_119 = arith.constant 16 : i32
    %322 = tpu.dynamic_rotate %321 by %c16_i32_119 dim 1 : vector<24x256xf32>, i32 -> vector<24x256xf32>
    %cst_120 = arith.constant 0.000000e+00 : f32
    %323 = vector.shape_cast %46 : vector<1x256xi1> to vector<1x256xi1>
    %324 = vector.broadcast %323 : vector<1x256xi1> to vector<24x256xi1>
    %325 = vector.broadcast %cst_120 : f32 to vector<24x256xf32>
    %326 = arith.select %324, %322, %325 : vector<24x256xi1>, vector<24x256xf32>
    %327 = arith.maximumf %326, %321 : vector<24x256xf32>
    %c240_i32_121 = arith.constant 240 : i32
    %328 = tpu.dynamic_rotate %321 by %c240_i32_121 dim 1 : vector<24x256xf32>, i32 -> vector<24x256xf32>
    %cst_122 = arith.constant 0.000000e+00 : f32
    %329 = vector.shape_cast %122 : vector<1x256xi1> to vector<1x256xi1>
    %330 = vector.broadcast %329 : vector<1x256xi1> to vector<24x256xi1>
    %331 = vector.broadcast %cst_122 : f32 to vector<24x256xf32>
    %332 = arith.select %330, %328, %331 : vector<24x256xi1>, vector<24x256xf32>
    %333 = arith.maximumf %327, %332 : vector<24x256xf32>
    %334 = vector.extract_strided_slice %333 {offsets = [0, 0], sizes = [24, 16], strides = [1, 1]} : vector<24x256xf32> to vector<24x16xf32>
    %335 = vector.extract_strided_slice %333 {offsets = [0, 32], sizes = [24, 16], strides = [1, 1]} : vector<24x256xf32> to vector<24x16xf32>
    %336 = vector.extract_strided_slice %333 {offsets = [0, 64], sizes = [24, 16], strides = [1, 1]} : vector<24x256xf32> to vector<24x16xf32>
    %337 = vector.extract_strided_slice %333 {offsets = [0, 96], sizes = [24, 16], strides = [1, 1]} : vector<24x256xf32> to vector<24x16xf32>
    %338 = vector.extract_strided_slice %333 {offsets = [0, 128], sizes = [24, 16], strides = [1, 1]} : vector<24x256xf32> to vector<24x16xf32>
    %339 = vector.extract_strided_slice %333 {offsets = [0, 160], sizes = [24, 16], strides = [1, 1]} : vector<24x256xf32> to vector<24x16xf32>
    %340 = vector.extract_strided_slice %333 {offsets = [0, 192], sizes = [24, 16], strides = [1, 1]} : vector<24x256xf32> to vector<24x16xf32>
    %341 = vector.extract_strided_slice %333 {offsets = [0, 224], sizes = [24, 16], strides = [1, 1]} : vector<24x256xf32> to vector<24x16xf32>
    %342 = tpu.concatenate %334, %335, %336, %337, %338, %339, %340, %341 in 0 : vector<24x16xf32>, vector<24x16xf32>, vector<24x16xf32>, vector<24x16xf32>, vector<24x16xf32>, vector<24x16xf32>, vector<24x16xf32>, vector<24x16xf32> -> vector<192x16xf32>
    %343 = tpu.iota {dimensions = array<i32: 0>} : vector<16x8xi32>
    %344 = tpu.iota {dimensions = array<i32: 1>} : vector<16x8xi32>
    %c2_i32 = arith.constant 2 : i32
    %345 = vector.broadcast %c2_i32 : i32 to vector<16x8xi32>
    %346 = arith.muli %345, %344 : vector<16x8xi32>
    %347 = arith.cmpi eq, %343, %346 : vector<16x8xi32>
    %348 = arith.extui %347 : vector<16x8xi1> to vector<16x8xi32>
    %349 = arith.sitofp %348 : vector<16x8xi32> to vector<16x8xf32>
    %cst_123 = arith.constant dense<0.000000e+00> : vector<192x8xf32>
    %350 = tpu.matmul %342, %349, %cst_123 {dimension_numbers = #tpu.dot_dimension_numbers<[1], [0], [0], [1], [0, 0, 1, 1], [], []>} : vector<192x16xf32>, vector<16x8xf32>, vector<192x8xf32> -> vector<192x8xf32>
    %351 = vector.extract_strided_slice %350 {offsets = [0, 0], sizes = [24, 8], strides = [1, 1]} : vector<192x8xf32> to vector<24x8xf32>
    %352 = vector.extract_strided_slice %350 {offsets = [24, 0], sizes = [24, 8], strides = [1, 1]} : vector<192x8xf32> to vector<24x8xf32>
    %353 = vector.extract_strided_slice %350 {offsets = [48, 0], sizes = [24, 8], strides = [1, 1]} : vector<192x8xf32> to vector<24x8xf32>
    %354 = vector.extract_strided_slice %350 {offsets = [72, 0], sizes = [24, 8], strides = [1, 1]} : vector<192x8xf32> to vector<24x8xf32>
    %355 = vector.extract_strided_slice %350 {offsets = [96, 0], sizes = [24, 8], strides = [1, 1]} : vector<192x8xf32> to vector<24x8xf32>
    %356 = vector.extract_strided_slice %350 {offsets = [120, 0], sizes = [24, 8], strides = [1, 1]} : vector<192x8xf32> to vector<24x8xf32>
    %357 = vector.extract_strided_slice %350 {offsets = [144, 0], sizes = [24, 8], strides = [1, 1]} : vector<192x8xf32> to vector<24x8xf32>
    %358 = vector.extract_strided_slice %350 {offsets = [168, 0], sizes = [24, 8], strides = [1, 1]} : vector<192x8xf32> to vector<24x8xf32>
    %359 = tpu.concatenate %351, %352, %353, %354, %355, %356, %357, %358 in 1 : vector<24x8xf32>, vector<24x8xf32>, vector<24x8xf32>, vector<24x8xf32>, vector<24x8xf32>, vector<24x8xf32>, vector<24x8xf32>, vector<24x8xf32> -> vector<24x64xf32>
    %cst_124 = arith.constant 0.000000e+00 : f32
    %360 = vector.broadcast %cst_124 : f32 to vector<24x64xf32>
    %361 = tpu.concatenate %359, %360 in 1 : vector<24x64xf32>, vector<24x64xf32> -> vector<24x128xf32>
    %c0_125 = arith.constant 0 : index
    %c0_126 = arith.constant 0 : index
    %c0_127 = arith.constant 0 : index
    %362 = vector.load %arg7[%c0_125, %c0_126, %c0_127] : memref<1x24x128xf32, #tpu.memory_space<vmem>>, vector<1x24x128xf32>
    %363 = vector.shape_cast %362 : vector<1x24x128xf32> to vector<24x128xf32>
    %364 = vector.shape_cast %361 : vector<24x128xf32> to vector<1x24x128xf32>
    tpu.vector_store %arg7[%c0_125, %c0_126, %c0_127], %364 {strides = array<i32>} : memref<1x24x128xf32, #tpu.memory_space<vmem>>, vector<1x24x128xf32>,
    return
  }
  func.func @transform_0(%arg0: i32) -> (i32, i32, i32) {
    %c0_i32 = arith.constant 0 : i32
    %c0_i32_0 = arith.constant 0 : i32
    %c0_i32_1 = arith.constant 0 : i32
    return %arg0, %c0_i32, %c0_i32_0 : i32, i32, i32
  }
  func.func @transform_1(%arg0: i32) -> (i32, i32, i32) {
    %c0_i32 = arith.constant 0 : i32
    %c0_i32_0 = arith.constant 0 : i32
    %c0_i32_1 = arith.constant 0 : i32
    return %arg0, %c0_i32, %c0_i32_0 : i32, i32, i32
  }
  func.func @transform_2(%arg0: i32) -> (i32, i32, i32) {
    %c0_i32 = arith.constant 0 : i32
    %c0_i32_0 = arith.constant 0 : i32
    %c0_i32_1 = arith.constant 0 : i32
    return %arg0, %c0_i32, %c0_i32_0 : i32, i32, i32
  }
  func.func @transform_3(%arg0: i32) -> (i32, i32) {
    %c0_i32 = arith.constant 0 : i32
    %c0_i32_0 = arith.constant 0 : i32
    %c0_i32_1 = arith.constant 0 : i32
    return %c0_i32, %c0_i32_0 : i32, i32
  }
  func.func @transform_4(%arg0: i32) -> (i32, i32) {
    %c0_i32 = arith.constant 0 : i32
    %c0_i32_0 = arith.constant 0 : i32
    %c0_i32_1 = arith.constant 0 : i32
    return %c0_i32, %c0_i32_0 : i32, i32
  }
  func.func @transform_5(%arg0: i32) -> (i32, i32) {
    %c0_i32 = arith.constant 0 : i32
    %c0_i32_0 = arith.constant 0 : i32
    %c0_i32_1 = arith.constant 0 : i32
    return %c0_i32, %c0_i32_0 : i32, i32
  }
  func.func @transform_6(%arg0: i32) -> (i32, i32, i32) {
    %c0_i32 = arith.constant 0 : i32
    %c0_i32_0 = arith.constant 0 : i32
    %c0_i32_1 = arith.constant 0 : i32
    return %arg0, %c0_i32, %c0_i32_0 : i32, i32, i32
  }
}

</mosaic_0001>

<llo_original>
// kernel: merge_conv_forward.1
$region0: #{merge_conv_forward.1}
  #allocation0 [shape = 'u32[]', space=smem, size = 0x4, offset = 0x4, fixed_abs, tag = 'smem constant byte address 0x4 - core index']
  #allocation1 [shape = 'u32[72,128]{1,0:T(1,128)}', space=vmem, size = 0x9000, scoped, tag = 'internal scratch']
  %s0 = inlined_call_operand.vmem [shape: f32[2,4,256], index: 0, kind: input, shape index: {}]
  %s1 = inlined_call_operand.vmem [shape: f32[2,4,256], index: 1, kind: input, shape index: {}]
  %s2 = inlined_call_operand.vmem [shape: f32[2,4,256], index: 2, kind: input, shape index: {}]
  %s3 = inlined_call_operand.vmem [shape: f32[8,36], index: 3, kind: input, shape index: {}]
  %s4 = inlined_call_operand.vmem [shape: f32[8,36], index: 4, kind: input, shape index: {}]
  %s5 = inlined_call_operand.vmem [shape: f32[8,180], index: 5, kind: input, shape index: {}]
  %s6 = inlined_call_operand.vmem [shape: f32[2,24,128], index: 6, kind: output, shape index: {}]
  %s7 = sld [smem:[#allocation0]]
  $region57: #{merge_conv_forward.1} parent=0
    _
  %s9 = ssub.s32 1, %s7
  %s10 = scalar_select 0, %s9, %s7
  loop: start=0, step=1, limit=4
  $region2: #{merge_conv_forward.1} parent=0 // loop_pre_header
    _
  $region3: #{merge_conv_forward.1} parent=0 // loop_header
    %s12 = sphi 0, %s16
    %p13 = scmp.ge.s32.totalorder %s12, 4
    %s22 = sphi 0, %s24
    %s25 = sphi 0, %s22
    %s26 = sphi 0, %s25
    %s42 = sphi 0, %s26
    %s48 = sphi 0, %s50
    %s51 = sphi 0, %s48
    %s52 = sphi 0, %s51
    %s68 = sphi 0, %s52
    %s74 = sphi 0, %s76
    %s77 = sphi 0, %s74
    %s78 = sphi 0, %s77
    %s94 = sphi 0, %s78
    %s98 = sphi 0, %s98
    %s100 = sphi 0, %s98
    %s101 = sphi 0, %s100
    %s115 = sphi 0, %s101
    %s119 = sphi 0, %s119
    %s121 = sphi 0, %s119
    %s122 = sphi 0, %s121
    %s136 = sphi 0, %s122
    %s140 = sphi 0, %s140
    %s142 = sphi 0, %s140
    %s143 = sphi 0, %s142
    %s157 = sphi 0, %s143
    %s163 = sphi 0, %s165
    %s166 = sphi 0, %s163
    %s167 = sphi 0, %s166
    %s183 = sphi 0, %s167
  $region4: #{merge_conv_forward.1} parent=0 // loop_header_branch
    %15 = sbr.rel (%p13) target = $region8
  $region5: #{merge_conv_forward.1} parent=0 // loop_body
    %s17 = ssub.s32 %s12, 1
    %s18 = ssub.s32 %s12, 2
    %s19 = sadd.s32 %s12, 1
    %s20 = ssub.s32 %s12, %s19
    %p21 = scmp.eq.s32.totalorder %s20, 0
    %s23 = sadd.s32 %s22, 1
    %s24 = scalar_select %p21, %s22, %s23
    %p27 = pneg %p21
    %p28 = scmp.eq.s32.totalorder %s12, 1
    %p29 = por %p27, %p28
    %p30 = scmp.ne.s32.totalorder %s22, %s25
    %p31 = scmp.eq.s32.totalorder %s12, 0
    %p32 = por %p30, %p31
    %p33 = scmp.ne.s32.totalorder %s22, %s25
    %p34 = scmp.eq.s32.totalorder %s17, 1
    %p35 = por %p33, %p34
    %p36 = scmp.ne.s32.totalorder %s25, %s26
    %p37 = scmp.eq.s32.totalorder %s17, 0
    %p38 = por %p36, %p37
    %p39 = scmp.ne.s32.totalorder %s25, %s26
    %p40 = scmp.eq.s32.totalorder %s18, 1
    %p41 = por %p39, %p40
    %p43 = scmp.ne.s32.totalorder %s26, %s42
    %p44 = scmp.eq.s32.totalorder %s18, 0
    %p45 = por %p43, %p44
    %s46 = ssub.s32 %s12, %s19
    %p47 = scmp.eq.s32.totalorder %s46, 0
    %s49 = sadd.s32 %s48, 1
    %s50 = scalar_select %p47, %s48, %s49
    %p53 = pneg %p47
    %p54 = scmp.eq.s32.totalorder %s12, 1
    %p55 = por %p53, %p54
    %p56 = scmp.ne.s32.totalorder %s48, %s51
    %p57 = scmp.eq.s32.totalorder %s12, 0
    %p58 = por %p56, %p57
    %p59 = scmp.ne.s32.totalorder %s48, %s51
    %p60 = scmp.eq.s32.totalorder %s17, 1
    %p61 = por %p59, %p60
    %p62 = scmp.ne.s32.totalorder %s51, %s52
    %p63 = scmp.eq.s32.totalorder %s17, 0
    %p64 = por %p62, %p63
    %p65 = scmp.ne.s32.totalorder %s51, %s52
    %p66 = scmp.eq.s32.totalorder %s18, 1
    %p67 = por %p65, %p66
    %p69 = scmp.ne.s32.totalorder %s52, %s68
    %p70 = scmp.eq.s32.totalorder %s18, 0
    %p71 = por %p69, %p70
    %s72 = ssub.s32 %s12, %s19
    %p73 = scmp.eq.s32.totalorder %s72, 0
    %s75 = sadd.s32 %s74, 1
    %s76 = scalar_select %p73, %s74, %s75
    %p79 = pneg %p73
    %p80 = scmp.eq.s32.totalorder %s12, 1
    %p81 = por %p79, %p80
    %p82 = scmp.ne.s32.totalorder %s74, %s77
    %p83 = scmp.eq.s32.totalorder %s12, 0
    %p84 = por %p82, %p83
    %p85 = scmp.ne.s32.totalorder %s74, %s77
    %p86 = scmp.eq.s32.totalorder %s17, 1
    %p87 = por %p85, %p86
    %p88 = scmp.ne.s32.totalorder %s77, %s78
    %p89 = scmp.eq.s32.totalorder %s17, 0
    %p90 = por %p88, %p89
    %p91 = scmp.ne.s32.totalorder %s77, %s78
    %p92 = scmp.eq.s32.totalorder %s18, 1
    %p93 = por %p91, %p92
    %p95 = scmp.ne.s32.totalorder %s78, %s94
    %p96 = scmp.eq.s32.totalorder %s18, 0
    %p97 = por %p95, %p96
    %s99 = sadd.s32 %s98, 1
    %p102 = scmp.eq.s32.totalorder %s12, 1
    %p103 = scmp.ne.s32.totalorder %s98, %s100
    %p104 = scmp.eq.s32.totalorder %s12, 0
    %p105 = por %p103, %p104
    %p106 = scmp.ne.s32.totalorder %s98, %s100
    %p107 = scmp.eq.s32.totalorder %s17, 1
    %p108 = por %p106, %p107
    %p109 = scmp.ne.s32.totalorder %s100, %s101
    %p110 = scmp.eq.s32.totalorder %s17, 0
    %p111 = por %p109, %p110
    %p112 = scmp.ne.s32.totalorder %s100, %s101
    %p113 = scmp.eq.s32.totalorder %s18, 1
    %p114 = por %p112, %p113
    %p116 = scmp.ne.s32.totalorder %s101, %s115
    %p117 = scmp.eq.s32.totalorder %s18, 0
    %p118 = por %p116, %p117
    %s120 = sadd.s32 %s119, 1
    %p123 = scmp.eq.s32.totalorder %s12, 1
    %p124 = scmp.ne.s32.totalorder %s119, %s121
    %p125 = scmp.eq.s32.totalorder %s12, 0
    %p126 = por %p124, %p125
    %p127 = scmp.ne.s32.totalorder %s119, %s121
    %p128 = scmp.eq.s32.totalorder %s17, 1
    %p129 = por %p127, %p128
    %p130 = scmp.ne.s32.totalorder %s121, %s122
    %p131 = scmp.eq.s32.totalorder %s17, 0
    %p132 = por %p130, %p131
    %p133 = scmp.ne.s32.totalorder %s121, %s122
    %p134 = scmp.eq.s32.totalorder %s18, 1
    %p135 = por %p133, %p134
    %p137 = scmp.ne.s32.totalorder %s122, %s136
    %p138 = scmp.eq.s32.totalorder %s18, 0
    %p139 = por %p137, %p138
    %s141 = sadd.s32 %s140, 1
    %p144 = scmp.eq.s32.totalorder %s12, 1
    %p145 = scmp.ne.s32.totalorder %s140, %s142
    %p146 = scmp.eq.s32.totalorder %s12, 0
    %p147 = por %p145, %p146
    %p148 = scmp.ne.s32.totalorder %s140, %s142
    %p149 = scmp.eq.s32.totalorder %s17, 1
    %p150 = por %p148, %p149
    %p151 = scmp.ne.s32.totalorder %s142, %s143
    %p152 = scmp.eq.s32.totalorder %s17, 0
    %p153 = por %p151, %p152
    %p154 = scmp.ne.s32.totalorder %s142, %s143
    %p155 = scmp.eq.s32.totalorder %s18, 1
    %p156 = por %p154, %p155
    %p158 = scmp.ne.s32.totalorder %s143, %s157
    %p159 = scmp.eq.s32.totalorder %s18, 0
    %p160 = por %p158, %p159
    %s161 = ssub.s32 %s12, %s19
    %p162 = scmp.eq.s32.totalorder %s161, 0
    %s164 = sadd.s32 %s163, 1
    %s165 = scalar_select %p162, %s163, %s164
    %p168 = pneg %p162
    %p169 = scmp.eq.s32.totalorder %s12, 1
    %p170 = por %p168, %p169
    %p171 = scmp.ne.s32.totalorder %s163, %s166
    %p172 = scmp.eq.s32.totalorder %s12, 0
    %p173 = por %p171, %p172
    %p174 = scmp.ne.s32.totalorder %s163, %s166
    %p175 = scmp.eq.s32.totalorder %s17, 1
    %p176 = por %p174, %p175
    %p177 = scmp.ne.s32.totalorder %s166, %s167
    %p178 = scmp.eq.s32.totalorder %s17, 0
    %p179 = por %p177, %p178
    %p180 = scmp.ne.s32.totalorder %s166, %s167
    %p181 = scmp.eq.s32.totalorder %s18, 1
    %p182 = por %p180, %p181
    %p184 = scmp.ne.s32.totalorder %s167, %s183
    %p185 = scmp.eq.s32.totalorder %s18, 0
    %p186 = por %p184, %p185
    %p187 = scmp.le.s32.totalorder 1, %s12
    %p188 = scmp.lt.s32.totalorder %s12, 3
    %p189 = pnand %p187, %p188
    %p190 = pneg %p189
    // Predicated region
    $region9: #{merge_conv_forward.1} parent=5 // pred_check
      _
    $region10: #{merge_conv_forward.1} parent=5 // pred_check_branch
      %192 = sbr.rel (%p189) target = $region12
    $region11: #{merge_conv_forward.1} parent=5 // pred_region
      %s193 = ssub.s32 %s12, 1
      // Predicated region
      $region13: #{merge_conv_forward.1} parent=11 // pred_check
        %p194 = pneg %p111
      $region14: #{merge_conv_forward.1} parent=11 // pred_check_branch
        %196 = sbr.rel (%p194) target = $region16
      $region15: #{merge_conv_forward.1} parent=11 // pred_region
        _
      $region16: #{merge_conv_forward.1} parent=11 // pred_fallthru
        _
      // Predicated region
      $region17: #{merge_conv_forward.1} parent=11 // pred_check
        %p197 = pneg %p132
      $region18: #{merge_conv_forward.1} parent=11 // pred_check_branch
        %199 = sbr.rel (%p197) target = $region20
      $region19: #{merge_conv_forward.1} parent=11 // pred_region
        _
      $region20: #{merge_conv_forward.1} parent=11 // pred_fallthru
        _
      // Predicated region
      $region21: #{merge_conv_forward.1} parent=11 // pred_check
        %p200 = pneg %p153
      $region22: #{merge_conv_forward.1} parent=11 // pred_check_branch
        %202 = sbr.rel (%p200) target = $region24
      $region23: #{merge_conv_forward.1} parent=11 // pred_region
        _
      $region24: #{merge_conv_forward.1} parent=11 // pred_fallthru
        _
    $region12: #{merge_conv_forward.1} parent=5 // pred_fallthru
      _
    %p203 = scmp.lt.s32.totalorder %s12, 2
    // Predicated region
    $region25: #{merge_conv_forward.1} parent=5 // pred_check
      %p204 = pneg %p203
    $region26: #{merge_conv_forward.1} parent=5 // pred_check_branch
      %206 = sbr.rel (%p204) target = $region28
    $region27: #{merge_conv_forward.1} parent=5 // pred_region
      // Predicated region
      $region29: #{merge_conv_forward.1} parent=27 // pred_check
        %p207 = pneg %p32
      $region30: #{merge_conv_forward.1} parent=27 // pred_check_branch
        %209 = sbr.rel (%p207) target = $region32
      $region31: #{merge_conv_forward.1} parent=27 // pred_region
        %p210 = scmp.lt.s32.totalorder %s12, 1
        %s211 = scalar_select %p210, %s12, 1
        %s212 = smul.addr %s211, 2
        %s213 = smul.addr %s212, 4
        %s214 = scalar_lea.vmem %s0, %s213
      $region32: #{merge_conv_forward.1} parent=27 // pred_fallthru
        _
      // Predicated region
      $region33: #{merge_conv_forward.1} parent=27 // pred_check
        %p215 = pneg %p58
      $region34: #{merge_conv_forward.1} parent=27 // pred_check_branch
        %217 = sbr.rel (%p215) target = $region36
      $region35: #{merge_conv_forward.1} parent=27 // pred_region
        %p218 = scmp.lt.s32.totalorder %s12, 1
        %s219 = scalar_select %p218, %s12, 1
        %s220 = smul.addr %s219, 2
        %s221 = smul.addr %s220, 4
        %s222 = scalar_lea.vmem %s1, %s221
      $region36: #{merge_conv_forward.1} parent=27 // pred_fallthru
        _
      // Predicated region
      $region37: #{merge_conv_forward.1} parent=27 // pred_check
        %p223 = pneg %p84
      $region38: #{merge_conv_forward.1} parent=27 // pred_check_branch
        %225 = sbr.rel (%p223) target = $region40
      $region39: #{merge_conv_forward.1} parent=27 // pred_region
        %p226 = scmp.lt.s32.totalorder %s12, 1
        %s227 = scalar_select %p226, %s12, 1
        %s228 = smul.addr %s227, 2
        %s229 = smul.addr %s228, 4
        %s230 = scalar_lea.vmem %s2, %s229
      $region40: #{merge_conv_forward.1} parent=27 // pred_fallthru
        _
    $region28: #{merge_conv_forward.1} parent=5 // pred_fallthru
      _
    %p231 = scmp.le.s32.totalorder 1, %s12
    %p232 = scmp.lt.s32.totalorder %s12, 3
    %p233 = pnand %p231, %p232
    %p234 = pneg %p233
    // Predicated region
    $region41: #{merge_conv_forward.1} parent=5 // pred_check
      _
    $region42: #{merge_conv_forward.1} parent=5 // pred_check_branch
      %236 = sbr.rel (%p233) target = $region44
    $region43: #{merge_conv_forward.1} parent=5 // pred_region
      %s237 = ssub.s32 %s12, 1
      %p238 = scmp.lt.s32.totalorder %s17, 1
      %s239 = scalar_select %p238, %s17, 1
      %s240 = smul.addr %s239, 2
      %s241 = smul.addr %s240, 4
      %s242 = scalar_lea.vmem %s0, %s241
      %p243 = pneg %p38
      %p244 = pneg %p35
      %p245 = scmp.lt.s32.totalorder %s17, 1
      %s246 = scalar_select %p245, %s17, 1
      %s247 = smul.addr %s246, 2
      %s248 = smul.addr %s247, 4
      %s249 = scalar_lea.vmem %s1, %s248
      %p250 = pneg %p64
      %p251 = pneg %p61
      %p252 = scmp.lt.s32.totalorder %s17, 1
      %s253 = scalar_select %p252, %s17, 1
      %s254 = smul.addr %s253, 2
      %s255 = smul.addr %s254, 4
      %s256 = scalar_lea.vmem %s2, %s255
      %p257 = pneg %p90
      %p258 = pneg %p87
      %p259 = pneg %p111
      %p260 = pneg %p108
      %p261 = pneg %p132
      %p262 = pneg %p129
      %p263 = pneg %p153
      %p264 = pneg %p150
      %p265 = pneg %p179
      %p266 = pneg %p176
      %p267 = scmp.lt.s32.totalorder %s17, 1
      %s268 = scalar_select %p267, %s17, 1
      %s269 = smul.addr %s268, 3
      %s270 = smul.addr %s269, 8
      %s271 = scalar_lea.vmem %s6, %s270
      %p272 = scmp.lt.s32.totalorder %s17, 1
      %s273 = scalar_select %p272, %s17, 1
      %s274 = smul.addr %s273, 2
      %s275 = smul.addr %s274, 4
      %s276 = scalar_lea.vmem %s0, %s275
      %p277 = scmp.lt.s32.totalorder %s17, 1
      %s278 = scalar_select %p277, %s17, 1
      %s279 = smul.addr %s278, 2
      %s280 = smul.addr %s279, 4
      %s281 = scalar_lea.vmem %s1, %s280
      %p282 = scmp.lt.s32.totalorder %s17, 1
      %s283 = scalar_select %p282, %s17, 1
      %s284 = smul.addr %s283, 2
      %s285 = smul.addr %s284, 4
      %s286 = scalar_lea.vmem %s2, %s285
      %p287 = scmp.lt.s32.totalorder %s17, 1
      %s288 = scalar_select %p287, %s17, 1
      %s289 = smul.addr %s288, 3
      %s290 = smul.addr %s289, 8
      %s291 = scalar_lea.vmem %s6, %s290
      %v292 = vlaneseq
      %v293 = vand.u32 %v292, 127
      %v294 = vadd.s32 %v293, 128
      %vm295 = vcmp.lt.s32.totalorder %v293, 0
      %v296 = vsub.s32 0, %v293
      %v297 = vsel %vm295, %v296, %v293
      %v298 = vshrl.u32 %v297, 4
      %v299 = vand.u32 %v297, 15
      %v300 = vsub.s32 0, %v299
      %v301 = vsel %vm295, %v300, %v299
      %vm302 = vcmp.lt.s32.totalorder %v294, 0
      %v303 = vsub.s32 0, %v294
      %v304 = vsel %vm302, %v303, %v294
      %v305 = vshrl.u32 %v304, 4
      %v306 = vand.u32 %v304, 15
      %v307 = vsub.s32 0, %v306
      %v308 = vsel %vm302, %v307, %v306
      %vm309 = vcmp.ne.s32.totalorder %v301, 0
      %vm310 = vcmp.ne.s32.totalorder %v308, 0
      %vm311 = vcmp.lt.s32.totalorder %v301, 0
      %vm312 = vcmp.lt.s32.totalorder %v308, 0
      %vm313 = vmand %vm311, %vm309
      %vm314 = vmand %vm312, %vm310
      %v315 = vadd.s32 %v301, 16
      %v316 = vadd.s32 %v308, 16
      %v317 = vsel %vm313, %v315, %v301
      %v318 = vsel %vm314, %v316, %v308
      %v319 = vld [vmem:[%s276] sm:$0xff]
      %321 = vst [vmem:[#allocation1] ss:$2 sm:$0xff] %v319
      %v322 = vld.sshfl [vmem:[#allocation1] sm:$0xff pattern:$0x75316420]
      %v323 = vld.sshfl [vmem:[#allocation1 + $0x8] sm:$0xff pattern:$0x75316420]
      %326 = vrot.lane.b32.xlu0 %v322, 17
      %v327 = vpop.permute.xlu0 %326
      %328 = vrot.lane.b32.xlu0 %v323, 17
      %v329 = vpop.permute.xlu0 %328
      %vm330 = vcmp.lt.s32.totalorder %v293, 17
      %v331 = vsel %vm330, %v327, %v329
      %v332 = vsel %vm330, %v329, %v327
      %v333 = vadd.s32 %v293, 4294967280
      %v334 = vadd.s32 %v294, 4294967280
      %vm335 = vcmp.ge.s32.totalorder %v333, 0
      %vm336 = vcmp.ge.s32.totalorder %v334, 0
      %vm337 = vcmp.lt.s32.totalorder %v333, 256
      %vm338 = vcmp.lt.s32.totalorder %v334, 256
      %v339 = vadd.s32 %v317, 4294967295
      %v340 = vadd.s32 %v318, 4294967295
      %vm341 = vcmp.ge.s32.totalorder %v339, 0
      %vm342 = vcmp.ge.s32.totalorder %v340, 0
      %vm343 = vcmp.lt.s32.totalorder %v339, 16
      %vm344 = vcmp.lt.s32.totalorder %v340, 16
      %vm345 = vmand %vm335, %vm337
      %vm346 = vmand %vm336, %vm338
      %vm347 = vmand %vm345, %vm341
      %vm348 = vmand %vm346, %vm342
      %vm349 = vmand %vm347, %vm343
      %vm350 = vmand %vm348, %vm344
      %v351 = vsel %vm349, 1, 0
      %v352 = vsel %vm350, 1, 0
      %vm353 = vcmp.eq.s32.totalorder %v351, 1
      %vm354 = vcmp.eq.s32.totalorder %v352, 1
      %v355 = vsel %vm353, %v332, 0.0
      %v356 = vsel %vm354, %v331, 0.0
      %357 = vst [vmem:[#allocation1] ss:$2 sm:$0xff] %v319
      %v358 = vld.sshfl [vmem:[#allocation1] sm:$0xff pattern:$0x75316420]
      %v359 = vld.sshfl [vmem:[#allocation1 + $0x8] sm:$0xff pattern:$0x75316420]
      %362 = vrot.lane.b32.xlu0 %v358, 16
      %v363 = vpop.permute.xlu0 %362
      %364 = vrot.lane.b32.xlu0 %v359, 16
      %v365 = vpop.permute.xlu0 %364
      %vm366 = vcmp.lt.s32.totalorder %v293, 16
      %v367 = vsel %vm366, %v363, %v365
      %v368 = vsel %vm366, %v365, %v363
      %v369 = vsel %vm345, 1, 0
      %v370 = vsel %vm346, 1, 0
      %vm371 = vcmp.eq.s32.totalorder %v369, 1
      %vm372 = vcmp.eq.s32.totalorder %v370, 1
      %v373 = vsel %vm371, %v368, 0.0
      %v374 = vsel %vm372, %v367, 0.0
      %375 = vst [vmem:[#allocation1] ss:$2 sm:$0xff] %v319
      %v376 = vld.sshfl [vmem:[#allocation1] sm:$0xff pattern:$0x75316420]
      %v377 = vld.sshfl [vmem:[#allocation1 + $0x8] sm:$0xff pattern:$0x75316420]
      %380 = vrot.lane.b32.xlu0 %v376, 15
      %v381 = vpop.permute.xlu0 %380
      %382 = vrot.lane.b32.xlu0 %v377, 15
      %v383 = vpop.permute.xlu0 %382
      %vm384 = vcmp.lt.s32.totalorder %v293, 15
      %v385 = vsel %vm384, %v381, %v383
      %v386 = vsel %vm384, %v383, %v381
      %v387 = vadd.s32 %v317, 1
      %v388 = vadd.s32 %v318, 1
      %vm389 = vcmp.ge.s32.totalorder %v387, 0
      %vm390 = vcmp.ge.s32.totalorder %v388, 0
      %vm391 = vcmp.lt.s32.totalorder %v387, 16
      %vm392 = vcmp.lt.s32.totalorder %v388, 16
      %vm393 = vmand %vm345, %vm389
      %vm394 = vmand %vm346, %vm390
      %vm395 = vmand %vm393, %vm391
      %vm396 = vmand %vm394, %vm392
      %v397 = vsel %vm395, 1, 0
      %v398 = vsel %vm396, 1, 0
      %vm399 = vcmp.eq.s32.totalorder %v397, 1
      %vm400 = vcmp.eq.s32.totalorder %v398, 1
      %v401 = vsel %vm399, %v386, 0.0
      %v402 = vsel %vm400, %v385, 0.0
      %403 = vst [vmem:[#allocation1] ss:$2 sm:$0xff] %v319
      %v404 = vld.sshfl [vmem:[#allocation1] sm:$0xff pattern:$0x75316420]
      %v405 = vld.sshfl [vmem:[#allocation1 + $0x8] sm:$0xff pattern:$0x75316420]
      %408 = vrot.lane.b32.xlu0 %v404, 1
      %v409 = vpop.permute.xlu0 %408
      %410 = vrot.lane.b32.xlu0 %v405, 1
      %v411 = vpop.permute.xlu0 %410
      %vm412 = vcmp.lt.s32.totalorder %v293, 1
      %v413 = vsel %vm412, %v409, %v411
      %v414 = vsel %vm412, %v411, %v409
      %vm415 = vmand %vm341, %vm343
      %vm416 = vmand %vm342, %vm344
      %v417 = vsel %vm415, 1, 0
      %v418 = vsel %vm416, 1, 0
      %vm419 = vcmp.eq.s32.totalorder %v417, 1
      %vm420 = vcmp.eq.s32.totalorder %v418, 1
      %v421 = vsel %vm419, %v414, 0.0
      %v422 = vsel %vm420, %v413, 0.0
      %423 = vst [vmem:[#allocation1] ss:$2 sm:$0xff] %v319
      %v424 = vld.sshfl [vmem:[#allocation1] sm:$0xff pattern:$0x75316420]
      %v425 = vld.sshfl [vmem:[#allocation1 + $0x8] sm:$0xff pattern:$0x75316420]
      %428 = vrot.lane.b32.xlu0 %v424, 127
      %v429 = vpop.permute.xlu0 %428
      %430 = vrot.lane.b32.xlu0 %v425, 127
      %v431 = vpop.permute.xlu0 %430
      %vm432 = vcmp.lt.s32.totalorder %v293, 127
      %v433 = vsel %vm432, %v429, %v431
      %v434 = vsel %vm432, %v431, %v429
      %vm435 = vmand %vm389, %vm391
      %vm436 = vmand %vm390, %vm392
      %v437 = vsel %vm435, 1, 0
      %v438 = vsel %vm436, 1, 0
      %vm439 = vcmp.eq.s32.totalorder %v437, 1
      %vm440 = vcmp.eq.s32.totalorder %v438, 1
      %v441 = vsel %vm439, %v433, 0.0
      %v442 = vsel %vm440, %v434, 0.0
      %443 = vst [vmem:[#allocation1] ss:$2 sm:$0xff] %v319
      %v444 = vld.sshfl [vmem:[#allocation1] sm:$0xff pattern:$0x75316420]
      %v445 = vld.sshfl [vmem:[#allocation1 + $0x8] sm:$0xff pattern:$0x75316420]
      %448 = vrot.lane.b32.xlu0 %v444, 113
      %v449 = vpop.permute.xlu0 %448
      %450 = vrot.lane.b32.xlu0 %v445, 113
      %v451 = vpop.permute.xlu0 %450
      %vm452 = vcmp.lt.s32.totalorder %v293, 113
      %v453 = vsel %vm452, %v449, %v451
      %v454 = vsel %vm452, %v451, %v449
      %v455 = vadd.s32 %v293, 16
      %v456 = vadd.s32 %v294, 16
      %vm457 = vcmp.ge.s32.totalorder %v455, 0
      %vm458 = vcmp.ge.s32.totalorder %v456, 0
      %vm459 = vcmp.lt.s32.totalorder %v455, 256
      %vm460 = vcmp.lt.s32.totalorder %v456, 256
      %vm461 = vmand %vm457, %vm459
      %vm462 = vmand %vm458, %vm460
      %vm463 = vmand %vm461, %vm341
      %vm464 = vmand %vm462, %vm342
      %vm465 = vmand %vm463, %vm343
      %vm466 = vmand %vm464, %vm344
      %v467 = vsel %vm465, 1, 0
      %v468 = vsel %vm466, 1, 0
      %vm469 = vcmp.eq.s32.totalorder %v467, 1
      %vm470 = vcmp.eq.s32.totalorder %v468, 1
      %v471 = vsel %vm469, %v453, 0.0
      %v472 = vsel %vm470, %v454, 0.0
      %473 = vst [vmem:[#allocation1] ss:$2 sm:$0xff] %v319
      %v474 = vld.sshfl [vmem:[#allocation1] sm:$0xff pattern:$0x75316420]
      %v475 = vld.sshfl [vmem:[#allocation1 + $0x8] sm:$0xff pattern:$0x75316420]
      %478 = vrot.lane.b32.xlu0 %v474, 112
      %v479 = vpop.permute.xlu0 %478
      %480 = vrot.lane.b32.xlu0 %v475, 112
      %v481 = vpop.permute.xlu0 %480
      %vm482 = vcmp.lt.s32.totalorder %v293, 112
      %v483 = vsel %vm482, %v479, %v481
      %v484 = vsel %vm482, %v481, %v479
      %v485 = vsel %vm461, 1, 0
      %v486 = vsel %vm462, 1, 0
      %vm487 = vcmp.eq.s32.totalorder %v485, 1
      %vm488 = vcmp.eq.s32.totalorder %v486, 1
      %v489 = vsel %vm487, %v483, 0.0
      %v490 = vsel %vm488, %v484, 0.0
      %491 = vst [vmem:[#allocation1] ss:$2 sm:$0xff] %v319
      %v492 = vld.sshfl [vmem:[#allocation1] sm:$0xff pattern:$0x75316420]
      %v493 = vld.sshfl [vmem:[#allocation1 + $0x8] sm:$0xff pattern:$0x75316420]
      %496 = vrot.lane.b32.xlu0 %v492, 111
      %v497 = vpop.permute.xlu0 %496
      %498 = vrot.lane.b32.xlu0 %v493, 111
      %v499 = vpop.permute.xlu0 %498
      %vm500 = vcmp.lt.s32.totalorder %v293, 111
      %v501 = vsel %vm500, %v497, %v499
      %v502 = vsel %vm500, %v499, %v497
      %vm503 = vmand %vm461, %vm389
      %vm504 = vmand %vm462, %vm390
      %vm505 = vmand %vm503, %vm391
      %vm506 = vmand %vm504, %vm392
      %v507 = vsel %vm505, 1, 0
      %v508 = vsel %vm506, 1, 0
      %vm509 = vcmp.eq.s32.totalorder %v507, 1
      %vm510 = vcmp.eq.s32.totalorder %v508, 1
      %v511 = vsel %vm509, %v501, 0.0
      %v512 = vsel %vm510, %v502, 0.0
      %v515 = vrot.slane %v373, 4
      %v516 = vrot.slane %v374, 4
      %v521 = vrot.slane %v421, 4
      %v522 = vrot.slane %v422, 4
      %525 = vst [vmem:[#allocation1] ss:$2 sm:$0xff] %v319
      %v526 = vld.sshfl [vmem:[#allocation1] sm:$0xff pattern:$0x75316420]
      %v527 = vld.sshfl [vmem:[#allocation1 + $0x8] sm:$0xff pattern:$0x75316420]
      %v532 = vrot.slane %v441, 4
      %v533 = vrot.slane %v442, 4
      %v538 = vrot.slane %v489, 4
      %v539 = vrot.slane %v490, 4
      %vm542 = vcmask 1043456
      %v543 = vsel %vm542, %v355, %v515
      %v544 = vsel %vm542, %v356, %v516
      %v545 = vsel %vm542, %v401, %v521
      %v546 = vsel %vm542, %v402, %v522
      %v547 = vsel %vm542, %v526, %v532
      %v548 = vsel %vm542, %v527, %v533
      %v549 = vsel %vm542, %v471, %v538
      %v550 = vsel %vm542, %v472, %v539
      %v551 = vld [vmem:[%s3] sm:$0xff]
      %vm552 = vcmask 293888
      %v554 = vsel %vm552, %v551, 0
      %v557 = vsel %vm542, %v511, 0
      %v560 = vsel %vm542, %v512, 0
      %562 = vmatpush.msra.mxu0 0.0
      %563 = vmatpush.msra.mxu0 0.0
      %564 = vmatpush.msra.mxu0 0.0
      %565 = vmatpush.msra.mxu0 0.0
      %566 = vmatpush.msra.mxu0 0.0
      %567 = vmatpush.msra.mxu0 0.0
      %568 = vmatpush.msra.mxu0 0.0
      %569 = vmatpush.msra.mxu0 0.0
      %570 = vmatpush.msra.mxu0 0.0
      %571 = vmatpush.msra.mxu0 0.0
      %572 = vmatpush.msra.mxu0 0.0
      %573 = vmatpush.msra.mxu0 %v557
      %574 = vmatpush.msra.mxu0 %v549
      %575 = vmatpush.msra.mxu0 %v547
      %576 = vmatpush.msra.mxu0 %v545
      %577 = vmatpush.msra.mxu0 %v543
      %578 = vmatmul.f32.gmra.mxu0 %v554
      %v579 = vpop.f32.mrf.mxu0
      %v580 = vadd.f32 0.0, %v579
      %581 = vdwg.mxu0
      %582 = vmatpush.msra.mxu0 0.0
      %583 = vmatpush.msra.mxu0 0.0
      %584 = vmatpush.msra.mxu0 0.0
      %585 = vmatpush.msra.mxu0 0.0
      %586 = vmatpush.msra.mxu0 0.0
      %587 = vmatpush.msra.mxu0 0.0
      %588 = vmatpush.msra.mxu0 0.0
      %589 = vmatpush.msra.mxu0 0.0
      %590 = vmatpush.msra.mxu0 0.0
      %591 = vmatpush.msra.mxu0 0.0
      %592 = vmatpush.msra.mxu0 0.0
      %593 = vmatpush.msra.mxu0 %v560
      %594 = vmatpush.msra.mxu0 %v550
      %595 = vmatpush.msra.mxu0 %v548
      %596 = vmatpush.msra.mxu0 %v546
      %597 = vmatpush.msra.mxu0 %v544
      %598 = vmatmul.f32.gmra.mxu0 %v554
      %v599 = vpop.f32.mrf.mxu0
      %v600 = vadd.f32 0.0, %v599
      %601 = vdwg.mxu0
      %v602 = vadd.f32 %v580, %v600
      %603 = vadd.xlane.f32.xlu0 %v602
      %v604 = vpop.xlane.xlu0 %603
      %v605 = vmul.f32 %v604, 0.00390625
      %v606 = vmul.f32 %v580, %v580
      %v607 = vmul.f32 %v600, %v600
      %v608 = vadd.f32 %v606, %v607
      %609 = vadd.xlane.f32.xlu0 %v608
      %v610 = vpop.xlane.xlu0 %609
      %v611 = vmul.f32 %v610, 0.00390625
      %v612 = vmul.f32 %v605, %v605
      %v613 = vsub.f32 %v611, %v612
      %v614 = vmax.f32 %v613, 0.0
      %v615 = vsub.f32 %v580, %v605
      %v616 = vsub.f32 %v600, %v605
      %v617 = vadd.f32 %v614, 1e-05
      %v618 = vrsqrt.pop %v617
      %v619 = vmul.f32 %v618, %v617
      %v620 = vmul.f32 %v619, %v618
      %v621 = vmul.f32 0.5, %v620
      %v622 = vsub.f32 1.5, %v621
      %v623 = vmul.f32 %v618, %v622
      %vm624 = vweird.f32 %v617
      %vm625 = vweird.f32 %v618
      %vm626 = vmor %vm624, %vm625
      %v627 = vsel %vm626, %v618, %v623
      %v628 = vmul.f32 %v615, %v627
      %v629 = vmul.f32 %v616, %v627
      %v630 = vmax.f32 %v628, 0.0
      %v631 = vmax.f32 %v629, 0.0
      %v632 = vld [vmem:[%s281] sm:$0xff]
      %634 = vst [vmem:[#allocation1] ss:$2 sm:$0xff] %v632
      %v635 = vld.sshfl [vmem:[#allocation1] sm:$0xff pattern:$0x75316420]
      %v636 = vld.sshfl [vmem:[#allocation1 + $0x8] sm:$0xff pattern:$0x75316420]
      %639 = vrot.lane.b32.xlu0 %v635, 17
      %v640 = vpop.permute.xlu0 %639
      %641 = vrot.lane.b32.xlu0 %v636, 17
      %v642 = vpop.permute.xlu0 %641
      %v643 = vsel %vm330, %v640, %v642
      %v644 = vsel %vm330, %v642, %v640
      %v645 = vsel %vm353, %v644, 0.0
      %v646 = vsel %vm354, %v643, 0.0
      %647 = vst [vmem:[#allocation1] ss:$2 sm:$0xff] %v632
      %v648 = vld.sshfl [vmem:[#allocation1] sm:$0xff pattern:$0x75316420]
      %v649 = vld.sshfl [vmem:[#allocation1 + $0x8] sm:$0xff pattern:$0x75316420]
      %652 = vrot.lane.b32.xlu0 %v648, 16
      %v653 = vpop.permute.xlu0 %652
      %654 = vrot.lane.b32.xlu0 %v649, 16
      %v655 = vpop.permute.xlu0 %654
      %v656 = vsel %vm366, %v653, %v655
      %v657 = vsel %vm366, %v655, %v653
      %v658 = vsel %vm371, %v657, 0.0
      %v659 = vsel %vm372, %v656, 0.0
      %660 = vst [vmem:[#allocation1] ss:$2 sm:$0xff] %v632
      %v661 = vld.sshfl [vmem:[#allocation1] sm:$0xff pattern:$0x75316420]
      %v662 = vld.sshfl [vmem:[#allocation1 + $0x8] sm:$0xff pattern:$0x75316420]
      %665 = vrot.lane.b32.xlu0 %v661, 15
      %v666 = vpop.permute.xlu0 %665
      %667 = vrot.lane.b32.xlu0 %v662, 15
      %v668 = vpop.permute.xlu0 %667
      %v669 = vsel %vm384, %v666, %v668
      %v670 = vsel %vm384, %v668, %v666
      %v671 = vsel %vm399, %v670, 0.0
      %v672 = vsel %vm400, %v669, 0.0
      %673 = vst [vmem:[#allocation1] ss:$2 sm:$0xff] %v632
      %v674 = vld.sshfl [vmem:[#allocation1] sm:$0xff pattern:$0x75316420]
      %v675 = vld.sshfl [vmem:[#allocation1 + $0x8] sm:$0xff pattern:$0x75316420]
      %678 = vrot.lane.b32.xlu0 %v674, 1
      %v679 = vpop.permute.xlu0 %678
      %680 = vrot.lane.b32.xlu0 %v675, 1
      %v681 = vpop.permute.xlu0 %680
      %v682 = vsel %vm412, %v679, %v681
      %v683 = vsel %vm412, %v681, %v679
      %v684 = vsel %vm419, %v683, 0.0
      %v685 = vsel %vm420, %v682, 0.0
      %686 = vst [vmem:[#allocation1] ss:$2 sm:$0xff] %v632
      %v687 = vld.sshfl [vmem:[#allocation1] sm:$0xff pattern:$0x75316420]
      %v688 = vld.sshfl [vmem:[#allocation1 + $0x8] sm:$0xff pattern:$0x75316420]
      %691 = vrot.lane.b32.xlu0 %v687, 127
      %v692 = vpop.permute.xlu0 %691
      %693 = vrot.lane.b32.xlu0 %v688, 127
      %v694 = vpop.permute.xlu0 %693
      %v695 = vsel %vm432, %v692, %v694
      %v696 = vsel %vm432, %v694, %v692
      %v697 = vsel %vm439, %v695, 0.0
      %v698 = vsel %vm440, %v696, 0.0
      %699 = vst [vmem:[#allocation1] ss:$2 sm:$0xff] %v632
      %v700 = vld.sshfl [vmem:[#allocation1] sm:$0xff pattern:$0x75316420]
      %v701 = vld.sshfl [vmem:[#allocation1 + $0x8] sm:$0xff pattern:$0x75316420]
      %704 = vrot.lane.b32.xlu0 %v700, 113
      %v705 = vpop.permute.xlu0 %704
      %706 = vrot.lane.b32.xlu0 %v701, 113
      %v707 = vpop.permute.xlu0 %706
      %v708 = vsel %vm452, %v705, %v707
      %v709 = vsel %vm452, %v707, %v705
      %v710 = vsel %vm469, %v708, 0.0
      %v711 = vsel %vm470, %v709, 0.0
      %712 = vst [vmem:[#allocation1] ss:$2 sm:$0xff] %v632
      %v713 = vld.sshfl [vmem:[#allocation1] sm:$0xff pattern:$0x75316420]
      %v714 = vld.sshfl [vmem:[#allocation1 + $0x8] sm:$0xff pattern:$0x75316420]
      %717 = vrot.lane.b32.xlu0 %v713, 112
      %v718 = vpop.permute.xlu0 %717
      %719 = vrot.lane.b32.xlu0 %v714, 112
      %v720 = vpop.permute.xlu0 %719
      %v721 = vsel %vm482, %v718, %v720
      %v722 = vsel %vm482, %v720, %v718
      %v723 = vsel %vm487, %v721, 0.0
      %v724 = vsel %vm488, %v722, 0.0
      %725 = vst [vmem:[#allocation1] ss:$2 sm:$0xff] %v632
      %v726 = vld.sshfl [vmem:[#allocation1] sm:$0xff pattern:$0x75316420]
      %v727 = vld.sshfl [vmem:[#allocation1 + $0x8] sm:$0xff pattern:$0x75316420]
      %730 = vrot.lane.b32.xlu0 %v726, 111
      %v731 = vpop.permute.xlu0 %730
      %732 = vrot.lane.b32.xlu0 %v727, 111
      %v733 = vpop.permute.xlu0 %732
      %v734 = vsel %vm500, %v731, %v733
      %v735 = vsel %vm500, %v733, %v731
      %v736 = vsel %vm509, %v734, 0.0
      %v737 = vsel %vm510, %v735, 0.0
      %v740 = vrot.slane %v658, 4
      %v741 = vrot.slane %v659, 4
      %v746 = vrot.slane %v684, 4
      %v747 = vrot.slane %v685, 4
      %750 = vst [vmem:[#allocation1] ss:$2 sm:$0xff] %v632
      %v751 = vld.sshfl [vmem:[#allocation1] sm:$0xff pattern:$0x75316420]
      %v752 = vld.sshfl [vmem:[#allocation1 + $0x8] sm:$0xff pattern:$0x75316420]
      %v757 = vrot.slane %v697, 4
      %v758 = vrot.slane %v698, 4
      %v763 = vrot.slane %v723, 4
      %v764 = vrot.slane %v724, 4
      %v767 = vsel %vm542, %v645, %v740
      %v768 = vsel %vm542, %v646, %v741
      %v769 = vsel %vm542, %v671, %v746
      %v770 = vsel %vm542, %v672, %v747
      %v771 = vsel %vm542, %v751, %v757
      %v772 = vsel %vm542, %v752, %v758
      %v773 = vsel %vm542, %v710, %v763
      %v774 = vsel %vm542, %v711, %v764
      %v775 = vld [vmem:[%s4] sm:$0xff]
      %v777 = vsel %vm552, %v775, 0
      %v780 = vsel %vm542, %v736, 0
      %v783 = vsel %vm542, %v737, 0
      %785 = vmatpush.msra.mxu0 0.0
      %786 = vmatpush.msra.mxu0 0.0
      %787 = vmatpush.msra.mxu0 0.0
      %788 = vmatpush.msra.mxu0 0.0
      %789 = vmatpush.msra.mxu0 0.0
      %790 = vmatpush.msra.mxu0 0.0
      %791 = vmatpush.msra.mxu0 0.0
      %792 = vmatpush.msra.mxu0 0.0
      %793 = vmatpush.msra.mxu0 0.0
      %794 = vmatpush.msra.mxu0 0.0
      %795 = vmatpush.msra.mxu0 0.0
      %796 = vmatpush.msra.mxu0 %v780
      %797 = vmatpush.msra.mxu0 %v773
      %798 = vmatpush.msra.mxu0 %v771
      %799 = vmatpush.msra.mxu0 %v769
      %800 = vmatpush.msra.mxu0 %v767
      %801 = vmatmul.f32.gmra.mxu0 %v777
      %v802 = vpop.f32.mrf.mxu0
      %v803 = vadd.f32 0.0, %v802
      %804 = vdwg.mxu0
      %805 = vmatpush.msra.mxu0 0.0
      %806 = vmatpush.msra.mxu0 0.0
      %807 = vmatpush.msra.mxu0 0.0
      %808 = vmatpush.msra.mxu0 0.0
      %809 = vmatpush.msra.mxu0 0.0
      %810 = vmatpush.msra.mxu0 0.0
      %811 = vmatpush.msra.mxu0 0.0
      %812 = vmatpush.msra.mxu0 0.0
      %813 = vmatpush.msra.mxu0 0.0
      %814 = vmatpush.msra.mxu0 0.0
      %815 = vmatpush.msra.mxu0 0.0
      %816 = vmatpush.msra.mxu0 %v783
      %817 = vmatpush.msra.mxu0 %v774
      %818 = vmatpush.msra.mxu0 %v772
      %819 = vmatpush.msra.mxu0 %v770
      %820 = vmatpush.msra.mxu0 %v768
      %821 = vmatmul.f32.gmra.mxu0 %v777
      %v822 = vpop.f32.mrf.mxu0
      %v823 = vadd.f32 0.0, %v822
      %824 = vdwg.mxu0
      %v825 = vadd.f32 %v803, %v823
      %826 = vadd.xlane.f32.xlu0 %v825
      %v827 = vpop.xlane.xlu0 %826
      %v828 = vmul.f32 %v827, 0.00390625
      %v829 = vmul.f32 %v803, %v803
      %v830 = vmul.f32 %v823, %v823
      %v831 = vadd.f32 %v829, %v830
      %832 = vadd.xlane.f32.xlu0 %v831
      %v833 = vpop.xlane.xlu0 %832
      %v834 = vmul.f32 %v833, 0.00390625
      %v835 = vmul.f32 %v828, %v828
      %v836 = vsub.f32 %v834, %v835
      %v837 = vmax.f32 %v836, 0.0
      %v838 = vsub.f32 %v803, %v828
      %v839 = vsub.f32 %v823, %v828
      %v840 = vadd.f32 %v837, 1e-05
      %v841 = vrsqrt.pop %v840
      %v842 = vmul.f32 %v841, %v840
      %v843 = vmul.f32 %v842, %v841
      %v844 = vmul.f32 0.5, %v843
      %v845 = vsub.f32 1.5, %v844
      %v846 = vmul.f32 %v841, %v845
      %vm847 = vweird.f32 %v840
      %vm848 = vweird.f32 %v841
      %vm849 = vmor %vm847, %vm848
      %v850 = vsel %vm849, %v841, %v846
      %v851 = vmul.f32 %v838, %v850
      %v852 = vmul.f32 %v839, %v850
      %v853 = vmax.f32 %v851, 0.0
      %v854 = vmax.f32 %v852, 0.0
      %v855 = vld [vmem:[%s286] sm:$0xff]
      %857 = vst [vmem:[#allocation1] ss:$2 sm:$0xff] %v855
      %v858 = vld.sshfl [vmem:[#allocation1] sm:$0xff pattern:$0x75316420]
      %v859 = vld.sshfl [vmem:[#allocation1 + $0x8] sm:$0xff pattern:$0x75316420]
      %v862 = vadd.f32 %v630, %v853
      %v863 = vadd.f32 %v631, %v854
      %864 = vrot.lane.b32.xlu0 %v630, 17
      %v865 = vpop.permute.xlu0 %864
      %866 = vrot.lane.b32.xlu0 %v853, 17
      %v867 = vpop.permute.xlu0 %866
      %868 = vrot.lane.b32.xlu0 %v858, 17
      %v869 = vpop.permute.xlu0 %868
      %870 = vrot.lane.b32.xlu0 %v631, 17
      %v871 = vpop.permute.xlu0 %870
      %872 = vrot.lane.b32.xlu0 %v854, 17
      %v873 = vpop.permute.xlu0 %872
      %874 = vrot.lane.b32.xlu0 %v859, 17
      %v875 = vpop.permute.xlu0 %874
      %v876 = vsel %vm330, %v865, %v871
      %v877 = vsel %vm330, %v867, %v873
      %v878 = vsel %vm330, %v869, %v875
      %v879 = vsel %vm330, %v871, %v865
      %v880 = vsel %vm330, %v873, %v867
      %v881 = vsel %vm330, %v875, %v869
      %v882 = vsel %vm353, %v879, 0.0
      %v883 = vsel %vm354, %v876, 0.0
      %v884 = vsel %vm353, %v880, 0.0
      %v885 = vsel %vm354, %v877, 0.0
      %v886 = vsel %vm353, %v881, 0.0
      %v887 = vsel %vm354, %v878, 0.0
      %888 = vrot.lane.b32.xlu0 %v630, 16
      %v889 = vpop.permute.xlu0 %888
      %890 = vrot.lane.b32.xlu0 %v853, 16
      %v891 = vpop.permute.xlu0 %890
      %892 = vrot.lane.b32.xlu0 %v858, 16
      %v893 = vpop.permute.xlu0 %892
      %894 = vrot.lane.b32.xlu0 %v631, 16
      %v895 = vpop.permute.xlu0 %894
      %896 = vrot.lane.b32.xlu0 %v854, 16
      %v897 = vpop.permute.xlu0 %896
      %898 = vrot.lane.b32.xlu0 %v859, 16
      %v899 = vpop.permute.xlu0 %898
      %v900 = vsel %vm366, %v889, %v895
      %v901 = vsel %vm366, %v891, %v897
      %v902 = vsel %vm366, %v893, %v899
      %v903 = vsel %vm366, %v895, %v889
      %v904 = vsel %vm366, %v897, %v891
      %v905 = vsel %vm366, %v899, %v893
      %v906 = vsel %vm371, %v903, 0.0
      %v907 = vsel %vm372, %v900, 0.0
      %v908 = vsel %vm371, %v904, 0.0
      %v909 = vsel %vm372, %v901, 0.0
      %v910 = vsel %vm371, %v905, 0.0
      %v911 = vsel %vm372, %v902, 0.0
      %912 = vrot.lane.b32.xlu0 %v630, 15
      %v913 = vpop.permute.xlu0 %912
      %914 = vrot.lane.b32.xlu0 %v853, 15
      %v915 = vpop.permute.xlu0 %914
      %916 = vrot.lane.b32.xlu0 %v858, 15
      %v917 = vpop.permute.xlu0 %916
      %918 = vrot.lane.b32.xlu0 %v631, 15
      %v919 = vpop.permute.xlu0 %918
      %920 = vrot.lane.b32.xlu0 %v854, 15
      %v921 = vpop.permute.xlu0 %920
      %922 = vrot.lane.b32.xlu0 %v859, 15
      %v923 = vpop.permute.xlu0 %922
      %v924 = vsel %vm384, %v913, %v919
      %v925 = vsel %vm384, %v915, %v921
      %v926 = vsel %vm384, %v917, %v923
      %v927 = vsel %vm384, %v919, %v913
      %v928 = vsel %vm384, %v921, %v915
      %v929 = vsel %vm384, %v923, %v917
      %v930 = vsel %vm399, %v927, 0.0
      %v931 = vsel %vm400, %v924, 0.0
      %v932 = vsel %vm399, %v928, 0.0
      %v933 = vsel %vm400, %v925, 0.0
      %v934 = vsel %vm399, %v929, 0.0
      %v935 = vsel %vm400, %v926, 0.0
      %936 = vrot.lane.b32.xlu0 %v630, 1
      %v937 = vpop.permute.xlu0 %936
      %938 = vrot.lane.b32.xlu0 %v853, 1
      %v939 = vpop.permute.xlu0 %938
      %940 = vrot.lane.b32.xlu0 %v858, 1
      %v941 = vpop.permute.xlu0 %940
      %942 = vrot.lane.b32.xlu0 %v631, 1
      %v943 = vpop.permute.xlu0 %942
      %944 = vrot.lane.b32.xlu0 %v854, 1
      %v945 = vpop.permute.xlu0 %944
      %946 = vrot.lane.b32.xlu0 %v859, 1
      %v947 = vpop.permute.xlu0 %946
      %v948 = vsel %vm412, %v937, %v943
      %v949 = vsel %vm412, %v939, %v945
      %v950 = vsel %vm412, %v941, %v947
      %v951 = vsel %vm412, %v943, %v937
      %v952 = vsel %vm412, %v945, %v939
      %v953 = vsel %vm412, %v947, %v941
      %v954 = vsel %vm419, %v951, 0.0
      %v955 = vsel %vm420, %v948, 0.0
      %v956 = vsel %vm419, %v952, 0.0
      %v957 = vsel %vm420, %v949, 0.0
      %v958 = vsel %vm419, %v953, 0.0
      %v959 = vsel %vm420, %v950, 0.0
      %960 = vrot.lane.b32.xlu0 %v630, 127
      %v961 = vpop.permute.xlu0 %960
      %962 = vrot.lane.b32.xlu0 %v853, 127
      %v963 = vpop.permute.xlu0 %962
      %964 = vrot.lane.b32.xlu0 %v858, 127
      %v965 = vpop.permute.xlu0 %964
      %966 = vrot.lane.b32.xlu0 %v631, 127
      %v967 = vpop.permute.xlu0 %966
      %968 = vrot.lane.b32.xlu0 %v854, 127
      %v969 = vpop.permute.xlu0 %968
      %970 = vrot.lane.b32.xlu0 %v859, 127
      %v971 = vpop.permute.xlu0 %970
      %v972 = vsel %vm432, %v961, %v967
      %v973 = vsel %vm432, %v963, %v969
      %v974 = vsel %vm432, %v965, %v971
      %v975 = vsel %vm432, %v967, %v961
      %v976 = vsel %vm432, %v969, %v963
      %v977 = vsel %vm432, %v971, %v965
      %v978 = vsel %vm439, %v972, 0.0
      %v979 = vsel %vm440, %v975, 0.0
      %v980 = vsel %vm439, %v973, 0.0
      %v981 = vsel %vm440, %v976, 0.0
      %v982 = vsel %vm439, %v974, 0.0
      %v983 = vsel %vm440, %v977, 0.0
      %984 = vrot.lane.b32.xlu0 %v630, 113
      %v985 = vpop.permute.xlu0 %984
      %986 = vrot.lane.b32.xlu0 %v853, 113
      %v987 = vpop.permute.xlu0 %986
      %988 = vrot.lane.b32.xlu0 %v858, 113
      %v989 = vpop.permute.xlu0 %988
      %990 = vrot.lane.b32.xlu0 %v631, 113
      %v991 = vpop.permute.xlu0 %990
      %992 = vrot.lane.b32.xlu0 %v854, 113
      %v993 = vpop.permute.xlu0 %992
      %994 = vrot.lane.b32.xlu0 %v859, 113
      %v995 = vpop.permute.xlu0 %994
      %v996 = vsel %vm452, %v985, %v991
      %v997 = vsel %vm452, %v987, %v993
      %v998 = vsel %vm452, %v989, %v995
      %v999 = vsel %vm452, %v991, %v985
      %v1000 = vsel %vm452, %v993, %v987
      %v1001 = vsel %vm452, %v995, %v989
      %v1002 = vsel %vm469, %v996, 0.0
      %v1003 = vsel %vm470, %v999, 0.0
      %v1004 = vsel %vm469, %v997, 0.0
      %v1005 = vsel %vm470, %v1000, 0.0
      %v1006 = vsel %vm469, %v998, 0.0
      %v1007 = vsel %vm470, %v1001, 0.0
      %1008 = vrot.lane.b32.xlu0 %v630, 112
      %v1009 = vpop.permute.xlu0 %1008
      %1010 = vrot.lane.b32.xlu0 %v853, 112
      %v1011 = vpop.permute.xlu0 %1010
      %1012 = vrot.lane.b32.xlu0 %v858, 112
      %v1013 = vpop.permute.xlu0 %1012
      %1014 = vrot.lane.b32.xlu0 %v631, 112
      %v1015 = vpop.permute.xlu0 %1014
      %1016 = vrot.lane.b32.xlu0 %v854, 112
      %v1017 = vpop.permute.xlu0 %1016
      %1018 = vrot.lane.b32.xlu0 %v859, 112
      %v1019 = vpop.permute.xlu0 %1018
      %v1020 = vsel %vm482, %v1009, %v1015
      %v1021 = vsel %vm482, %v1011, %v1017
      %v1022 = vsel %vm482, %v1013, %v1019
      %v1023 = vsel %vm482, %v1015, %v1009
      %v1024 = vsel %vm482, %v1017, %v1011
      %v1025 = vsel %vm482, %v1019, %v1013
      %v1026 = vsel %vm487, %v1020, 0.0
      %v1027 = vsel %vm488, %v1023, 0.0
      %v1028 = vsel %vm487, %v1021, 0.0
      %v1029 = vsel %vm488, %v1024, 0.0
      %v1030 = vsel %vm487, %v1022, 0.0
      %v1031 = vsel %vm488, %v1025, 0.0
      %1032 = vrot.lane.b32.xlu0 %v630, 111
      %v1033 = vpop.permute.xlu0 %1032
      %1034 = vrot.lane.b32.xlu0 %v853, 111
      %v1035 = vpop.permute.xlu0 %1034
      %1036 = vrot.lane.b32.xlu0 %v858, 111
      %v1037 = vpop.permute.xlu0 %1036
      %1038 = vrot.lane.b32.xlu0 %v631, 111
      %v1039 = vpop.permute.xlu0 %1038
      %1040 = vrot.lane.b32.xlu0 %v854, 111
      %v1041 = vpop.permute.xlu0 %1040
      %1042 = vrot.lane.b32.xlu0 %v859, 111
      %v1043 = vpop.permute.xlu0 %1042
      %v1044 = vsel %vm500, %v1033, %v1039
      %v1045 = vsel %vm500, %v1035, %v1041
      %v1046 = vsel %vm500, %v1037, %v1043
      %v1047 = vsel %vm500, %v1039, %v1033
      %v1048 = vsel %vm500, %v1041, %v1035
      %v1049 = vsel %vm500, %v1043, %v1037
      %v1050 = vsel %vm509, %v1044, 0.0
      %v1051 = vsel %vm510, %v1047, 0.0
      %v1052 = vsel %vm509, %v1045, 0.0
      %v1053 = vsel %vm510, %v1048, 0.0
      %v1054 = vsel %vm509, %v1046, 0.0
      %v1055 = vsel %vm510, %v1049, 0.0
      %v1062 = vrot.slane %v906, 4
      %v1063 = vrot.slane %v907, 4
      %v1064 = vrot.slane %v908, 4
      %v1065 = vsel %vm542, %v1062, %v1064
      %v1066 = vrot.slane %v909, 4
      %v1067 = vsel %vm542, %v1063, %v1066
      %v1068 = vrot.slane %v910, 4
      %v1069 = vsel %vm542, %v1064, %v1068
      %v1070 = vrot.slane %v911, 4
      %v1071 = vsel %vm542, %v1066, %v1070
      %v1084 = vrot.slane %v954, 4
      %v1085 = vrot.slane %v955, 4
      %v1086 = vrot.slane %v956, 4
      %v1087 = vsel %vm542, %v1084, %v1086
      %v1088 = vrot.slane %v957, 4
      %v1089 = vsel %vm542, %v1085, %v1088
      %v1090 = vrot.slane %v958, 4
      %v1091 = vsel %vm542, %v1086, %v1090
      %v1092 = vrot.slane %v959, 4
      %v1093 = vsel %vm542, %v1088, %v1092
      %v1106 = vrot.slane %v978, 4
      %v1107 = vrot.slane %v979, 4
      %v1108 = vrot.slane %v980, 4
      %v1109 = vsel %vm542, %v1106, %v1108
      %v1110 = vrot.slane %v981, 4
      %v1111 = vsel %vm542, %v1107, %v1110
      %v1112 = vrot.slane %v982, 4
      %v1113 = vsel %vm542, %v1108, %v1112
      %v1114 = vrot.slane %v983, 4
      %v1115 = vsel %vm542, %v1110, %v1114
      %v1128 = vrot.slane %v1026, 4
      %v1129 = vrot.slane %v1027, 4
      %v1130 = vrot.slane %v1028, 4
      %v1131 = vsel %vm542, %v1128, %v1130
      %v1132 = vrot.slane %v1029, 4
      %v1133 = vsel %vm542, %v1129, %v1132
      %v1134 = vrot.slane %v1030, 4
      %v1135 = vsel %vm542, %v1130, %v1134
      %v1136 = vrot.slane %v1031, 4
      %v1137 = vsel %vm542, %v1132, %v1136
      %v1144 = vsel %vm542, %v886, %v1062
      %v1145 = vsel %vm542, %v887, %v1063
      %v1146 = vsel %vm542, %v934, %v1084
      %v1147 = vsel %vm542, %v935, %v1085
      %v1148 = vsel %vm542, %v858, %v1106
      %v1149 = vsel %vm542, %v859, %v1107
      %v1150 = vsel %vm542, %v1006, %v1128
      %v1151 = vsel %vm542, %v1007, %v1129
      %v1152 = vld [vmem:[%s5] sm:$0xff]
      %v1153 = vld [vmem:[%s5 + $0x8] sm:$0xff]
      %vm1154 = vcmask 424960
      %v1156 = vsel %vm1154, %v1153, 0
      %v1159 = vsel %vm542, %v1054, 0
      %v1162 = vsel %vm542, %v1055, 0
      %1164 = vmatpush.msra.mxu0 %v1002
      %1165 = vmatpush.msra.mxu0 %v1113
      %1166 = vmatpush.msra.mxu0 %v1109
      %1167 = vmatpush.msra.mxu0 %v1148
      %1168 = vmatpush.msra.mxu0 %v853
      %1169 = vmatpush.msra.mxu0 %v630
      %1170 = vmatpush.msra.mxu0 %v1091
      %1171 = vmatpush.msra.mxu0 %v1087
      %1172 = vmatpush.msra.mxu0 %v1146
      %1173 = vmatpush.msra.mxu0 %v932
      %1174 = vmatpush.msra.mxu0 %v930
      %1175 = vmatpush.msra.mxu0 %v1069
      %1176 = vmatpush.msra.mxu0 %v1065
      %1177 = vmatpush.msra.mxu0 %v1144
      %1178 = vmatpush.msra.mxu0 %v884
      %1179 = vmatpush.msra.mxu0 %v882
      %1180 = vmatmul.f32.gmra.mxu0 %v1152
      %v1181 = vpop.f32.mrf.mxu0
      %v1182 = vadd.f32 0.0, %v1181
      %1183 = vdwg.mxu0
      %1184 = vmatpush.msra.mxu0 0.0
      %1185 = vmatpush.msra.mxu0 0.0
      %1186 = vmatpush.msra.mxu0 0.0
      %1187 = vmatpush.msra.mxu0 0.0
      %1188 = vmatpush.msra.mxu0 0.0
      %1189 = vmatpush.msra.mxu0 0.0
      %1190 = vmatpush.msra.mxu0 0.0
      %1191 = vmatpush.msra.mxu0 0.0
      %1192 = vmatpush.msra.mxu0 0.0
      %1193 = vmatpush.msra.mxu0 %v1159
      %1194 = vmatpush.msra.mxu0 %v1052
      %1195 = vmatpush.msra.mxu0 %v1050
      %1196 = vmatpush.msra.mxu0 %v1135
      %1197 = vmatpush.msra.mxu0 %v1131
      %1198 = vmatpush.msra.mxu0 %v1150
      %1199 = vmatpush.msra.mxu0 %v1004
      %1200 = vmatmul.f32.gmra.mxu0 %v1156
      %v1201 = vpop.f32.mrf.mxu0
      %v1202 = vadd.f32 %v1182, %v1201
      %1203 = vdwg.mxu0
      %1204 = vmatpush.msra.mxu0 %v1003
      %1205 = vmatpush.msra.mxu0 %v1115
      %1206 = vmatpush.msra.mxu0 %v1111
      %1207 = vmatpush.msra.mxu0 %v1149
      %1208 = vmatpush.msra.mxu0 %v854
      %1209 = vmatpush.msra.mxu0 %v631
      %1210 = vmatpush.msra.mxu0 %v1093
      %1211 = vmatpush.msra.mxu0 %v1089
      %1212 = vmatpush.msra.mxu0 %v1147
      %1213 = vmatpush.msra.mxu0 %v933
      %1214 = vmatpush.msra.mxu0 %v931
      %1215 = vmatpush.msra.mxu0 %v1071
      %1216 = vmatpush.msra.mxu0 %v1067
      %1217 = vmatpush.msra.mxu0 %v1145
      %1218 = vmatpush.msra.mxu0 %v885
      %1219 = vmatpush.msra.mxu0 %v883
      %1220 = vmatmul.f32.gmra.mxu0 %v1152
      %v1221 = vpop.f32.mrf.mxu0
      %v1222 = vadd.f32 0.0, %v1221
      %1223 = vdwg.mxu0
      %1224 = vmatpush.msra.mxu0 0.0
      %1225 = vmatpush.msra.mxu0 0.0
      %1226 = vmatpush.msra.mxu0 0.0
      %1227 = vmatpush.msra.mxu0 0.0
      %1228 = vmatpush.msra.mxu0 0.0
      %1229 = vmatpush.msra.mxu0 0.0
      %1230 = vmatpush.msra.mxu0 0.0
      %1231 = vmatpush.msra.mxu0 0.0
      %1232 = vmatpush.msra.mxu0 0.0
      %1233 = vmatpush.msra.mxu0 %v1162
      %1234 = vmatpush.msra.mxu0 %v1053
      %1235 = vmatpush.msra.mxu0 %v1051
      %1236 = vmatpush.msra.mxu0 %v1137
      %1237 = vmatpush.msra.mxu0 %v1133
      %1238 = vmatpush.msra.mxu0 %v1151
      %1239 = vmatpush.msra.mxu0 %v1005
      %1240 = vmatmul.f32.gmra.mxu0 %v1156
      %v1241 = vpop.f32.mrf.mxu0
      %v1242 = vadd.f32 %v1222, %v1241
      %1243 = vdwg.mxu0
      %v1244 = vadd.f32 %v1202, %v1242
      %1245 = vadd.xlane.f32.xlu0 %v1244
      %v1246 = vpop.xlane.xlu0 %1245
      %v1247 = vmul.f32 %v1246, 0.00390625
      %v1248 = vmul.f32 %v1202, %v1202
      %v1249 = vmul.f32 %v1242, %v1242
      %v1250 = vadd.f32 %v1248, %v1249
      %1251 = vadd.xlane.f32.xlu0 %v1250
      %v1252 = vpop.xlane.xlu0 %1251
      %v1253 = vmul.f32 %v1252, 0.00390625
      %v1254 = vmul.f32 %v1247, %v1247
      %v1255 = vsub.f32 %v1253, %v1254
      %v1256 = vmax.f32 %v1255, 0.0
      %v1257 = vsub.f32 %v1202, %v1247
      %v1258 = vsub.f32 %v1242, %v1247
      %v1259 = vadd.f32 %v1256, 1e-05
      %v1260 = vrsqrt.pop %v1259
      %v1261 = vmul.f32 %v1260, %v1259
      %v1262 = vmul.f32 %v1261, %v1260
      %v1263 = vmul.f32 0.5, %v1262
      %v1264 = vsub.f32 1.5, %v1263
      %v1265 = vmul.f32 %v1260, %v1264
      %vm1266 = vweird.f32 %v1259
      %vm1267 = vweird.f32 %v1260
      %vm1268 = vmor %vm1266, %vm1267
      %v1269 = vsel %vm1268, %v1260, %v1265
      %v1270 = vmul.f32 %v1257, %v1269
      %v1271 = vmul.f32 %v1258, %v1269
      %v1272 = vmax.f32 %v1270, 0.0
      %v1273 = vmax.f32 %v1271, 0.0
      %v1274 = vadd.f32 %v862, %v1272
      %v1275 = vadd.f32 %v863, %v1273
      %1276 = vrot.lane.b32.xlu0 %v1274, 1
      %v1277 = vpop.permute.xlu0 %1276
      %1278 = vrot.lane.b32.xlu0 %v1275, 1
      %v1279 = vpop.permute.xlu0 %1278
      %v1280 = vsel %vm412, %v1277, %v1279
      %v1281 = vsel %vm412, %v1279, %v1277
      %v1282 = vsel %vm419, %v1281, 0.0
      %v1283 = vsel %vm420, %v1280, 0.0
      %v1284 = vmax.f32 %v954, %v630
      %v1285 = vmax.f32 %v955, %v631
      %v1286 = vmax.f32 %v956, %v853
      %v1287 = vmax.f32 %v957, %v854
      %v1288 = vmax.f32 %v1282, %v1274
      %v1289 = vmax.f32 %v1283, %v1275
      %1290 = vrot.lane.b32.xlu0 %v1274, 127
      %v1291 = vpop.permute.xlu0 %1290
      %1292 = vrot.lane.b32.xlu0 %v1275, 127
      %v1293 = vpop.permute.xlu0 %1292
      %v1294 = vsel %vm432, %v1291, %v1293
      %v1295 = vsel %vm432, %v1293, %v1291
      %v1296 = vsel %vm439, %v1294, 0.0
      %v1297 = vsel %vm440, %v1295, 0.0
      %v1298 = vmax.f32 %v1284, %v978
      %v1299 = vmax.f32 %v1285, %v979
      %v1300 = vmax.f32 %v1286, %v980
      %v1301 = vmax.f32 %v1287, %v981
      %v1302 = vmax.f32 %v1288, %v1296
      %v1303 = vmax.f32 %v1289, %v1297
      %1304 = vrot.lane.b32.xlu0 %v1298, 16
      %v1305 = vpop.permute.xlu0 %1304
      %1306 = vrot.lane.b32.xlu0 %v1300, 16
      %v1307 = vpop.permute.xlu0 %1306
      %1308 = vrot.lane.b32.xlu0 %v1302, 16
      %v1309 = vpop.permute.xlu0 %1308
      %1310 = vrot.lane.b32.xlu0 %v1299, 16
      %v1311 = vpop.permute.xlu0 %1310
      %1312 = vrot.lane.b32.xlu0 %v1301, 16
      %v1313 = vpop.permute.xlu0 %1312
      %1314 = vrot.lane.b32.xlu0 %v1303, 16
      %v1315 = vpop.permute.xlu0 %1314
      %v1316 = vsel %vm366, %v1305, %v1311
      %v1317 = vsel %vm366, %v1307, %v1313
      %v1318 = vsel %vm366, %v1309, %v1315
      %v1319 = vsel %vm366, %v1311, %v1305
      %v1320 = vsel %vm366, %v1313, %v1307
      %v1321 = vsel %vm366, %v1315, %v1309
      %v1322 = vsel %vm371, %v1319, 0.0
      %v1323 = vsel %vm372, %v1316, 0.0
      %v1324 = vsel %vm371, %v1320, 0.0
      %v1325 = vsel %vm372, %v1317, 0.0
      %v1326 = vsel %vm371, %v1321, 0.0
      %v1327 = vsel %vm372, %v1318, 0.0
      %v1328 = vmax.f32 %v1322, %v1298
      %v1329 = vmax.f32 %v1323, %v1299
      %v1330 = vmax.f32 %v1324, %v1300
      %v1331 = vmax.f32 %v1325, %v1301
      %v1332 = vmax.f32 %v1326, %v1302
      %v1333 = vmax.f32 %v1327, %v1303
      %1334 = vrot.lane.b32.xlu0 %v1298, 112
      %v1335 = vpop.permute.xlu0 %1334
      %1336 = vrot.lane.b32.xlu0 %v1300, 112
      %v1337 = vpop.permute.xlu0 %1336
      %1338 = vrot.lane.b32.xlu0 %v1302, 112
      %v1339 = vpop.permute.xlu0 %1338
      %1340 = vrot.lane.b32.xlu0 %v1299, 112
      %v1341 = vpop.permute.xlu0 %1340
      %1342 = vrot.lane.b32.xlu0 %v1301, 112
      %v1343 = vpop.permute.xlu0 %1342
      %1344 = vrot.lane.b32.xlu0 %v1303, 112
      %v1345 = vpop.permute.xlu0 %1344
      %v1346 = vsel %vm482, %v1335, %v1341
      %v1347 = vsel %vm482, %v1337, %v1343
      %v1348 = vsel %vm482, %v1339, %v1345
      %v1349 = vsel %vm482, %v1341, %v1335
      %v1350 = vsel %vm482, %v1343, %v1337
      %v1351 = vsel %vm482, %v1345, %v1339
      %v1352 = vsel %vm487, %v1346, 0.0
      %v1353 = vsel %vm488, %v1349, 0.0
      %v1354 = vsel %vm487, %v1347, 0.0
      %v1355 = vsel %vm488, %v1350, 0.0
      %v1356 = vsel %vm487, %v1348, 0.0
      %v1357 = vsel %vm488, %v1351, 0.0
      %v1358 = vmax.f32 %v1328, %v1352
      %v1359 = vmax.f32 %v1329, %v1353
      %v1360 = vmax.f32 %v1330, %v1354
      %v1361 = vmax.f32 %v1331, %v1355
      %v1362 = vmax.f32 %v1332, %v1356
      %v1363 = vmax.f32 %v1333, %v1357
      %1367 = vrot.lane.b32.xlu0 %v1358, 96
      %v1368 = vpop.permute.xlu0 %1367
      %1369 = vrot.lane.b32.xlu0 %v1360, 96
      %v1370 = vpop.permute.xlu0 %1369
      %1371 = vrot.lane.b32.xlu0 %v1362, 96
      %v1372 = vpop.permute.xlu0 %1371
      %1373 = vrot.lane.b32.xlu0 %v1358, 64
      %v1374 = vpop.permute.xlu0 %1373
      %1375 = vrot.lane.b32.xlu0 %v1360, 64
      %v1376 = vpop.permute.xlu0 %1375
      %1377 = vrot.lane.b32.xlu0 %v1362, 64
      %v1378 = vpop.permute.xlu0 %1377
      %1379 = vrot.lane.b32.xlu0 %v1358, 32
      %v1380 = vpop.permute.xlu0 %1379
      %1381 = vrot.lane.b32.xlu0 %v1360, 32
      %v1382 = vpop.permute.xlu0 %1381
      %1383 = vrot.lane.b32.xlu0 %v1362, 32
      %v1384 = vpop.permute.xlu0 %1383
      %1388 = vrot.lane.b32.xlu0 %v1359, 96
      %v1389 = vpop.permute.xlu0 %1388
      %1390 = vrot.lane.b32.xlu0 %v1361, 96
      %v1391 = vpop.permute.xlu0 %1390
      %1392 = vrot.lane.b32.xlu0 %v1363, 96
      %v1393 = vpop.permute.xlu0 %1392
      %1394 = vrot.lane.b32.xlu0 %v1359, 64
      %v1395 = vpop.permute.xlu0 %1394
      %1396 = vrot.lane.b32.xlu0 %v1361, 64
      %v1397 = vpop.permute.xlu0 %1396
      %1398 = vrot.lane.b32.xlu0 %v1363, 64
      %v1399 = vpop.permute.xlu0 %1398
      %1400 = vrot.lane.b32.xlu0 %v1359, 32
      %v1401 = vpop.permute.xlu0 %1400
      %1402 = vrot.lane.b32.xlu0 %v1361, 32
      %v1403 = vpop.permute.xlu0 %1402
      %1404 = vrot.lane.b32.xlu0 %v1363, 32
      %v1405 = vpop.permute.xlu0 %1404
      %v1406 = vlaneseq
      %v1407 = vshrl.u32 %v1406, 7
      %v1408 = vadd.s32 %v1407, 8
      %v1409 = vmul.u32 %v293, 2
      %vm1410 = vcmp.eq.s32.totalorder %v1407, %v1409
      %vm1411 = vcmp.eq.s32.totalorder %v1408, %v1409
      %v1412 = vsel %vm1410, 1, 0
      %v1413 = vsel %vm1411, 1, 0
      %v1414 = vcvt.s32.f32 %v1412
      %v1415 = vcvt.s32.f32 %v1413
      %vm1416 = vcmask 130048
      %v1417 = vsel %vm1416, %v1358, 0
      %v1419 = vsel %vm1416, %v1360, 0
      %v1421 = vsel %vm1416, %v1362, 0
      %v1423 = vsel %vm1416, %v1368, 0
      %v1425 = vsel %vm1416, %v1370, 0
      %v1427 = vsel %vm1416, %v1372, 0
      %v1429 = vsel %vm1416, %v1374, 0
      %v1431 = vsel %vm1416, %v1376, 0
      %v1433 = vsel %vm1416, %v1378, 0
      %v1435 = vsel %vm1416, %v1380, 0
      %v1437 = vsel %vm1416, %v1382, 0
      %v1439 = vsel %vm1416, %v1384, 0
      %v1441 = vsel %vm1416, %v1359, 0
      %v1443 = vsel %vm1416, %v1361, 0
      %v1445 = vsel %vm1416, %v1363, 0
      %v1447 = vsel %vm1416, %v1389, 0
      %v1449 = vsel %vm1416, %v1391, 0
      %v1451 = vsel %vm1416, %v1393, 0
      %v1453 = vsel %vm1416, %v1395, 0
      %v1455 = vsel %vm1416, %v1397, 0
      %v1457 = vsel %vm1416, %v1399, 0
      %v1459 = vsel %vm1416, %v1401, 0
      %v1461 = vsel %vm1416, %v1403, 0
      %v1463 = vsel %vm1416, %v1405, 0
      %1465 = vmatpush.msra.mxu0 0.0
      %1466 = vmatpush.msra.mxu0 0.0
      %1467 = vmatpush.msra.mxu0 0.0
      %1468 = vmatpush.msra.mxu0 0.0
      %1469 = vmatpush.msra.mxu0 0.0
      %1470 = vmatpush.msra.mxu0 0.0
      %1471 = vmatpush.msra.mxu0 0.0
      %1472 = vmatpush.msra.mxu0 0.0
      %1473 = vmatpush.msra.mxu0 0.0
      %1474 = vmatpush.msra.mxu0 0.0
      %1475 = vmatpush.msra.mxu0 0.0
      %1476 = vmatpush.msra.mxu0 0.0
      %1477 = vmatpush.msra.mxu0 0.0
      %1478 = vmatpush.msra.mxu0 0.0
      %1479 = vmatpush.msra.mxu0 %v1415
      %1480 = vmatpush.msra.mxu0 %v1414
      %1481 = vmatmul.f32.gmra.mxu0 %v1417
      %v1482 = vpop.f32.mrf.mxu0
      %v1483 = vadd.f32 0.0, %v1482
      %1484 = vmatmul.f32.gmra.mxu0 %v1419
      %v1485 = vpop.f32.mrf.mxu0
      %v1486 = vadd.f32 0.0, %v1485
      %1487 = vmatmul.f32.gmra.mxu0 %v1421
      %v1488 = vpop.f32.mrf.mxu0
      %v1489 = vadd.f32 0.0, %v1488
      %1490 = vmatmul.f32.gmra.mxu0 %v1423
      %v1491 = vpop.f32.mrf.mxu0
      %v1492 = vadd.f32 0.0, %v1491
      %1493 = vmatmul.f32.gmra.mxu0 %v1425
      %v1494 = vpop.f32.mrf.mxu0
      %v1495 = vadd.f32 0.0, %v1494
      %1496 = vmatmul.f32.gmra.mxu0 %v1427
      %v1497 = vpop.f32.mrf.mxu0
      %v1498 = vadd.f32 0.0, %v1497
      %1499 = vmatmul.f32.gmra.mxu0 %v1429
      %v1500 = vpop.f32.mrf.mxu0
      %v1501 = vadd.f32 0.0, %v1500
      %1502 = vmatmul.f32.gmra.mxu0 %v1431
      %v1503 = vpop.f32.mrf.mxu0
      %v1504 = vadd.f32 0.0, %v1503
      %1505 = vmatmul.f32.gmra.mxu0 %v1433
      %v1506 = vpop.f32.mrf.mxu0
      %v1507 = vadd.f32 0.0, %v1506
      %1508 = vmatmul.f32.gmra.mxu0 %v1435
      %v1509 = vpop.f32.mrf.mxu0
      %v1510 = vadd.f32 0.0, %v1509
      %1511 = vmatmul.f32.gmra.mxu0 %v1437
      %v1512 = vpop.f32.mrf.mxu0
      %v1513 = vadd.f32 0.0, %v1512
      %1514 = vmatmul.f32.gmra.mxu0 %v1439
      %v1515 = vpop.f32.mrf.mxu0
      %v1516 = vadd.f32 0.0, %v1515
      %1517 = vmatmul.f32.gmra.mxu0 %v1441
      %v1518 = vpop.f32.mrf.mxu0
      %v1519 = vadd.f32 0.0, %v1518
      %1520 = vmatmul.f32.gmra.mxu0 %v1443
      %v1521 = vpop.f32.mrf.mxu0
      %v1522 = vadd.f32 0.0, %v1521
      %1523 = vmatmul.f32.gmra.mxu0 %v1445
      %v1524 = vpop.f32.mrf.mxu0
      %v1525 = vadd.f32 0.0, %v1524
      %1526 = vmatmul.f32.gmra.mxu0 %v1447
      %v1527 = vpop.f32.mrf.mxu0
      %v1528 = vadd.f32 0.0, %v1527
      %1529 = vmatmul.f32.gmra.mxu0 %v1449
      %v1530 = vpop.f32.mrf.mxu0
      %v1531 = vadd.f32 0.0, %v1530
      %1532 = vmatmul.f32.gmra.mxu0 %v1451
      %v1533 = vpop.f32.mrf.mxu0
      %v1534 = vadd.f32 0.0, %v1533
      %1535 = vmatmul.f32.gmra.mxu0 %v1453
      %v1536 = vpop.f32.mrf.mxu0
      %v1537 = vadd.f32 0.0, %v1536
      %1538 = vmatmul.f32.gmra.mxu0 %v1455
      %v1539 = vpop.f32.mrf.mxu0
      %v1540 = vadd.f32 0.0, %v1539
      %1541 = vmatmul.f32.gmra.mxu0 %v1457
      %v1542 = vpop.f32.mrf.mxu0
      %v1543 = vadd.f32 0.0, %v1542
      %1544 = vmatmul.f32.gmra.mxu0 %v1459
      %v1545 = vpop.f32.mrf.mxu0
      %v1546 = vadd.f32 0.0, %v1545
      %1547 = vmatmul.f32.gmra.mxu0 %v1461
      %v1548 = vpop.f32.mrf.mxu0
      %v1549 = vadd.f32 0.0, %v1548
      %1550 = vmatmul.f32.gmra.mxu0 %v1463
      %v1551 = vpop.f32.mrf.mxu0
      %v1552 = vadd.f32 0.0, %v1551
      %1553 = vdwg.mxu0
      %1557 = vrot.lane.b32.xlu0 %v1492, 8
      %v1558 = vpop.permute.xlu0 %1557
      %1559 = vrot.lane.b32.xlu0 %v1495, 8
      %v1560 = vpop.permute.xlu0 %1559
      %1561 = vrot.lane.b32.xlu0 %v1498, 8
      %v1562 = vpop.permute.xlu0 %1561
      %1569 = vrot.lane.b32.xlu0 %v1501, 16
      %v1570 = vpop.permute.xlu0 %1569
      %1571 = vrot.lane.b32.xlu0 %v1504, 16
      %v1572 = vpop.permute.xlu0 %1571
      %1573 = vrot.lane.b32.xlu0 %v1507, 16
      %v1574 = vpop.permute.xlu0 %1573
      %1581 = vrot.lane.b32.xlu0 %v1510, 24
      %v1582 = vpop.permute.xlu0 %1581
      %1583 = vrot.lane.b32.xlu0 %v1513, 24
      %v1584 = vpop.permute.xlu0 %1583
      %1585 = vrot.lane.b32.xlu0 %v1516, 24
      %v1586 = vpop.permute.xlu0 %1585
      %1593 = vrot.lane.b32.xlu0 %v1519, 32
      %v1594 = vpop.permute.xlu0 %1593
      %1595 = vrot.lane.b32.xlu0 %v1522, 32
      %v1596 = vpop.permute.xlu0 %1595
      %1597 = vrot.lane.b32.xlu0 %v1525, 32
      %v1598 = vpop.permute.xlu0 %1597
      %1605 = vrot.lane.b32.xlu0 %v1528, 40
      %v1606 = vpop.permute.xlu0 %1605
      %1607 = vrot.lane.b32.xlu0 %v1531, 40
      %v1608 = vpop.permute.xlu0 %1607
      %1609 = vrot.lane.b32.xlu0 %v1534, 40
      %v1610 = vpop.permute.xlu0 %1609
      %1617 = vrot.lane.b32.xlu0 %v1537, 48
      %v1618 = vpop.permute.xlu0 %1617
      %1619 = vrot.lane.b32.xlu0 %v1540, 48
      %v1620 = vpop.permute.xlu0 %1619
      %1621 = vrot.lane.b32.xlu0 %v1543, 48
      %v1622 = vpop.permute.xlu0 %1621
      %1629 = vrot.lane.b32.xlu0 %v1546, 56
      %v1630 = vpop.permute.xlu0 %1629
      %1631 = vrot.lane.b32.xlu0 %v1549, 56
      %v1632 = vpop.permute.xlu0 %1631
      %1633 = vrot.lane.b32.xlu0 %v1552, 56
      %v1634 = vpop.permute.xlu0 %1633
      %vm1638 = vcmask 64512
      %v1639 = vsel %vm1638, %v1483, %v1558
      %v1640 = vsel %vm1638, %v1486, %v1560
      %v1641 = vsel %vm1638, %v1489, %v1562
      %v1642 = vsel %vm1416, %v1639, %v1570
      %v1643 = vsel %vm1416, %v1640, %v1572
      %v1644 = vsel %vm1416, %v1641, %v1574
      %vm1645 = vcmask 195584
      %v1646 = vsel %vm1645, %v1642, %v1582
      %v1647 = vsel %vm1645, %v1643, %v1584
      %v1648 = vsel %vm1645, %v1644, %v1586
      %vm1649 = vcmask 261120
      %v1650 = vsel %vm1649, %v1646, %v1594
      %v1651 = vsel %vm1649, %v1647, %v1596
      %v1652 = vsel %vm1649, %v1648, %v1598
      %vm1653 = vcmask 326656
      %v1654 = vsel %vm1653, %v1650, %v1606
      %v1655 = vsel %vm1653, %v1651, %v1608
      %v1656 = vsel %vm1653, %v1652, %v1610
      %vm1657 = vcmask 392192
      %v1658 = vsel %vm1657, %v1654, %v1618
      %v1659 = vsel %vm1657, %v1655, %v1620
      %v1660 = vsel %vm1657, %v1656, %v1622
      %vm1661 = vcmask 457728
      %v1662 = vsel %vm1661, %v1658, %v1630
      %v1663 = vsel %vm1661, %v1659, %v1632
      %v1664 = vsel %vm1661, %v1660, %v1634
      %vm1665 = vcmask 523264
      %v1666 = vsel %vm1665, %v1662, 0.0
      %v1667 = vsel %vm1665, %v1663, 0.0
      %v1668 = vsel %vm1665, %v1664, 0.0
      %1669 = vst [vmem:[%s291] sm:$0xff] %v1666
      %1670 = vst [vmem:[%s291 + $0x8] sm:$0xff] %v1667
      %1671 = vst [vmem:[%s291 + $0x10] sm:$0xff] %v1668
      %p1672 = scmp.lt.s32.totalorder %s17, 1
      %s1673 = scalar_select %p1672, %s17, 1
      %s1674 = smul.addr %s1673, 3
      %s1675 = smul.addr %s1674, 8
      %s1676 = scalar_lea.vmem %s6, %s1675
      // Predicated region
      $region45: #{merge_conv_forward.1} parent=43 // pred_check
        %p1677 = pneg %p176
      $region46: #{merge_conv_forward.1} parent=43 // pred_check_branch
        %1679 = sbr.rel (%p1677) target = $region48
      $region47: #{merge_conv_forward.1} parent=43 // pred_region
        _
      $region48: #{merge_conv_forward.1} parent=43 // pred_fallthru
        _
    $region44: #{merge_conv_forward.1} parent=5 // pred_fallthru
      _
    %p1680 = scmp.le.s32.totalorder 2, %s12
    // Predicated region
    $region49: #{merge_conv_forward.1} parent=5 // pred_check
      %p1681 = pneg %p1680
    $region50: #{merge_conv_forward.1} parent=5 // pred_check_branch
      %1683 = sbr.rel (%p1681) target = $region52
    $region51: #{merge_conv_forward.1} parent=5 // pred_region
      %s1684 = ssub.s32 %s12, 2
      // Predicated region
      $region53: #{merge_conv_forward.1} parent=51 // pred_check
        %p1685 = pneg %p182
      $region54: #{merge_conv_forward.1} parent=51 // pred_check_branch
        %1687 = sbr.rel (%p1685) target = $region56
      $region55: #{merge_conv_forward.1} parent=51 // pred_region
        %p1688 = scmp.lt.s32.totalorder %s18, 1
        %s1689 = scalar_select %p1688, %s18, 1
        %s1690 = smul.addr %s1689, 3
        %s1691 = smul.addr %s1690, 8
        %s1692 = scalar_lea.vmem %s6, %s1691
      $region56: #{merge_conv_forward.1} parent=51 // pred_fallthru
        _
    $region52: #{merge_conv_forward.1} parent=5 // pred_fallthru
      _
  $region6: #{merge_conv_forward.1} parent=0 // loop_footer
    %s16 = sadd.s32 1, %s12
  $region7: #{merge_conv_forward.1} parent=0 // loop_footer_branch
    %11 = sbr.rel target = $region3
  $region8: #{merge_conv_forward.1} parent=0 // loop_exit
    _

</llo_original>
